<compile_context>
chip_gen: v6e
topology: v6e:2x2x1
jax: 0.10.0
libtpu: 0.0.40
codegen_flags: <defaults>
</compile_context>

<pallas_src>
import math

import jax
import jax.numpy as jnp
from jax import lax
from jax.experimental import pallas as pl
from jax.experimental.pallas import tpu as pltpu

_HALF_PI = 0.5 * math.pi


def _hybrid_ae_kernel(x_ref, w1h_ref, b1h_ref, q1_ref, q2_ref, w2t_ref,
                      b2_ref, o_ref):
    # fc1 (pre-halved): u2[Q, TB] = (W1/2) @ x^T.  The batch tile stays in its
    # natural [TB, D] layout; the dot contracts x on its last dim ("NT"), so
    # no wrapper transpose and the activations come out lane-dense [Q, TB].
    u2 = lax.dot_general(
        w1h_ref[...], x_ref[...],
        dimension_numbers=(((1,), (1,)), ((), ())),
        preferred_element_type=jnp.float32)                       # [Q, TB]

    # sigmoid(u)*pi = tanh(u/2)*(pi/2) + pi/2; the +pi/2 is folded into q1_eff.
    t = jnp.tanh(u2 + b1h_ref[...])                               # [Q, TB]
    # q_layer1 surrogate: per-qubit <Z> = cos(x_i + theta_i).
    e = jnp.cos(t * _HALF_PI + q1_ref[...])                       # [Q, TB]
    # (e/2 + 0.5)*pi then q_layer2 surrogate; +pi/2 folded into q2_eff.
    # Padded qubits (j >= E) are computed too but their W2 columns are zero.
    z = jnp.cos(e * _HALF_PI + q2_ref[...])                       # [Q, TB]

    # fc2: out[TB, D] = z^T @ W2z^T  ("TN" dot), zero-padded-qubit columns of
    # W2 zeroed on the host, their constant contribution folded into b2_eff.
    out = lax.dot_general(
        z, w2t_ref[...],
        dimension_numbers=(((0,), (0,)), ((), ())),
        preferred_element_type=jnp.float32)                       # [TB, D]
    o_ref[...] = (out + b2_ref[...]).astype(o_ref.dtype)


_TILE_TIERS = (32768, 16384, 8192, 4096, 2048, 1024, 512, 256, 128)


def _num_tensorcores() -> int:
    """Heuristic TensorCore count of one visible device (2 on v7x / v4 / v5p
    megacore, otherwise 1)."""
    try:
        kind = jax.devices()[0].device_kind.lower()
    except Exception:
        return 1
    if any(tag in kind for tag in ("v7", "v4", "v5p")):
        return 2
    return 1


def _choose_batch_tile(B: int, D: int, num_tc: int,
                       vmem_budget_bytes: int = 12 << 20) -> int:
    """Largest batch tile dividing B that fits a conservative VMEM budget.

    2-TC chips: keep an even number of grid steps so ("parallel",) splits
    batch evenly across both TensorCores.  Single-TC chips: fewest steps."""
    def fits(tb):
        # input + output tile, double-buffered, f32
        return 2 * 2 * tb * D * 4 <= vmem_budget_bytes

    if num_tc >= 2:
        for tb in _TILE_TIERS:
            if B % tb == 0 and (B // tb) % num_tc == 0 and fits(tb):
                return tb
    for tb in _TILE_TIERS:
        if B % tb == 0 and fits(tb):
            return tb
    # Last resort: one whole-array block (legal; perf cliff only if B is not
    # nicely aligned / very large).
    return B


def prepare_kernel_params(params, *, embedding_size: int):
    """Host-side constant folding (torch-layout params -> kernel params)."""
    E = embedding_size
    w1, b1 = params["w1"], params["b1"]      # [Q, D], [Q]
    w2, b2 = params["w2"], params["b2"]      # [D, Q], [D]
    q1, q2 = params["q1"], params["q2"]      # [Q], [Q]
    Q = w1.shape[0]

    # sigmoid(u)*pi = tanh(u/2)*(pi/2) + pi/2 -> pre-halve fc1, fold +pi/2
    # into the q_layer1 angle.
    w1h = 0.5 * w1
    b1h = (0.5 * b1).reshape(-1, 1)
    q1eff = (q1 + _HALF_PI).reshape(-1, 1)
    # (e/2 + 0.5)*pi feeding q_layer2: fold the +pi/2 into q2.
    q2eff = (q2 + _HALF_PI).reshape(-1, 1)

    # Zero-padded qubits j >= E contribute the constant cos(q2_j): fold into
    # b2 and zero their W2 columns so no sublane slice is needed in-kernel.
    if E < Q:
        b2eff = b2 + w2[:, E:] @ jnp.cos(q2[E:])
        w2z = w2.at[:, E:].set(0.0)
    else:
        b2eff = b2
        w2z = w2

    return {
        "w1h": w1h,                      # [Q, D]
        "b1h": b1h,                      # [Q, 1]
        "q1eff": q1eff,                  # [Q, 1]
        "q2eff": q2eff,                  # [Q, 1]
        "w2zT": w2z.T,                   # [Q, D]
        "b2eff": b2eff.reshape(1, -1),   # [1, D]
    }


def hybrid_autoencoder_forward(x, params, *, embedding_size: int, tb=None):
    """x: [B, input_size] float32 (natural layout).  Returns [B, input_size]."""
    B, D = x.shape
    Q = params["w1"].shape[0]
    kp = prepare_kernel_params(params, embedding_size=embedding_size)

    num_tc = _num_tensorcores()
    tb = tb if tb is not None else _choose_batch_tile(B, D, num_tc)
    assert B % tb == 0, "batch must be divisible by the batch tile"
    grid = (B // tb,)

    # Parameter blocks have constant index_maps -> DMA'd once, stay resident.
    const = lambda shape: pl.BlockSpec(shape, lambda i: (0, 0))

    out = pl.pallas_call(
        _hybrid_ae_kernel,
        out_shape=jax.ShapeDtypeStruct((B, D), jnp.float32),
        grid_spec=pltpu.PrefetchScalarGridSpec(
            num_scalar_prefetch=0,
            grid=grid,
            in_specs=[
                pl.BlockSpec((tb, D), lambda i: (i, 0)),   # x batch tile [tb, D]
                const((Q, D)),                             # W1 / 2
                const((Q, 1)),                             # b1 / 2
                const((Q, 1)),                             # q1 + pi/2
                const((Q, 1)),                             # q2 + pi/2
                const((Q, D)),                             # (W2 with cols>=E zeroed)^T
                const((1, D)),                             # b2 + W2[:, E:] @ cos(q2[E:])
            ],
            out_specs=pl.BlockSpec((tb, D), lambda i: (i, 0)),
        ),
        compiler_params=pltpu.CompilerParams(
            dimension_semantics=("parallel",)),
    )(x, kp["w1h"], kp["b1h"], kp["q1eff"], kp["q2eff"], kp["w2zT"],
      kp["b2eff"])
    return out


def init_params(key, input_size: int, q_num: int):
    """torch-style init: Linear weights/biases uniform(+-1/sqrt(fan_in)),
    quantum-layer angles uniform [0, 2*pi).  Layouts match torch.nn.Linear."""
    k1, k2, k3, k4, k5, k6 = jax.random.split(key, 6)
    bd1 = 1.0 / math.sqrt(input_size)
    bd2 = 1.0 / math.sqrt(q_num)
    return {
        "w1": jax.random.uniform(k1, (q_num, input_size), jnp.float32, -bd1, bd1),
        "b1": jax.random.uniform(k2, (q_num,), jnp.float32, -bd1, bd1),
        "q1": jax.random.uniform(k3, (q_num,), jnp.float32, 0.0, 2.0 * math.pi),
        "q2": jax.random.uniform(k4, (q_num,), jnp.float32, 0.0, 2.0 * math.pi),
        "w2": jax.random.uniform(k5, (input_size, q_num), jnp.float32, -bd2, bd2),
        "b2": jax.random.uniform(k6, (input_size,), jnp.float32, -bd2, bd2),
    }


def reference_forward(x, params, *, embedding_size: int):
    """Pure-JAX reference of the same semantics (exact sigmoid), for checks."""
    Q = params["w1"].shape[0]
    h = jax.nn.sigmoid(x @ params["w1"].T + params["b1"]) * math.pi
    e = jnp.cos(h + params["q1"])                 # q_layer1 surrogate
    e = (e / 2.0 + 0.5) * math.pi
    e = e[:, :embedding_size]
    e = jnp.concatenate(
        [e, jnp.zeros((x.shape[0], Q - embedding_size), x.dtype)], axis=1)
    z = jnp.cos(e + params["q2"])                 # q_layer2 surrogate
    return z @ params["w2"].T + params["b2"]


if __name__ == "__main__":
    input_size = 16
    q_num = 8
    embedding_size = 4
    batch = 512            # small demo; real workloads use tiles up to 32768

    key = jax.random.PRNGKey(0)
    kx, kp = jax.random.split(key)
    x = jax.random.normal(kx, (batch, input_size), jnp.float32)
    params = init_params(kp, input_size, q_num)

    out = hybrid_autoencoder_forward(x, params, embedding_size=embedding_size)
    out = jax.block_until_ready(out)

    ref = reference_forward(x, params, embedding_size=embedding_size)
    assert out.shape == (batch, input_size)
    err = float(jnp.max(jnp.abs(out - ref)))
    assert jnp.allclose(out, ref, atol=5e-3, rtol=1e-3), (
        f"mismatch vs JAX reference: max abs err = {err:.3e}")
    print("KERNEL_OK")
</pallas_src>

<mosaic_0001>
module attributes {stable_mosaic.version = 11 : i64} {
  func.func @_hybrid_ae_kernel(%arg0: i32, %arg1: memref<512x16xf32, #tpu.memory_space<vmem>>, %arg2: memref<8x16xf32, #tpu.memory_space<vmem>>, %arg3: memref<8x1xf32, #tpu.memory_space<vmem>>, %arg4: memref<8x1xf32, #tpu.memory_space<vmem>>, %arg5: memref<8x1xf32, #tpu.memory_space<vmem>>, %arg6: memref<8x16xf32, #tpu.memory_space<vmem>>, %arg7: memref<1x16xf32, #tpu.memory_space<vmem>>, %arg8: memref<512x16xf32, #tpu.memory_space<vmem>>) attributes {dimension_semantics = [#tpu.dimension_semantics<parallel>], iteration_bounds = array<i64: 1>, scalar_prefetch = 0 : i64, scratch_operands = 0 : i64, tpu.core_type = #tpu.core_type<tc>, window_params = [{transform_indices = @transform_0, window_bounds = array<i64: 512, 16>}, {pipeline_mode = #tpu.pipeline_mode<synchronous>, transform_indices = @transform_1, window_bounds = array<i64: 8, 16>}, {pipeline_mode = #tpu.pipeline_mode<synchronous>, transform_indices = @transform_2, window_bounds = array<i64: 8, 1>}, {pipeline_mode = #tpu.pipeline_mode<synchronous>, transform_indices = @transform_3, window_bounds = array<i64: 8, 1>}, {pipeline_mode = #tpu.pipeline_mode<synchronous>, transform_indices = @transform_4, window_bounds = array<i64: 8, 1>}, {pipeline_mode = #tpu.pipeline_mode<synchronous>, transform_indices = @transform_5, window_bounds = array<i64: 8, 16>}, {pipeline_mode = #tpu.pipeline_mode<synchronous>, transform_indices = @transform_6, window_bounds = array<i64: 1, 16>}, {transform_indices = @transform_7, window_bounds = array<i64: 512, 16>}]} {
    %c0 = arith.constant 0 : index
    %c0_0 = arith.constant 0 : index
    %0 = vector.load %arg2[%c0, %c0_0] : memref<8x16xf32, #tpu.memory_space<vmem>>, vector<8x16xf32>
    %c0_1 = arith.constant 0 : index
    %c0_2 = arith.constant 0 : index
    %1 = vector.load %arg1[%c0_1, %c0_2] : memref<512x16xf32, #tpu.memory_space<vmem>>, vector<512x16xf32>
    %cst = arith.constant dense<0.000000e+00> : vector<8x512xf32>
    %2 = tpu.matmul %0, %1, %cst {dimension_numbers = #tpu.dot_dimension_numbers<[1], [1], [0], [0], [0, 0, 1, 0], [], []>} : vector<8x16xf32>, vector<512x16xf32>, vector<8x512xf32> -> vector<8x512xf32>
    %c0_3 = arith.constant 0 : index
    %c0_4 = arith.constant 0 : index
    %3 = vector.load %arg3[%c0_3, %c0_4] : memref<8x1xf32, #tpu.memory_space<vmem>>, vector<8x1xf32>
    %4 = vector.broadcast %3 : vector<8x1xf32> to vector<8x512xf32>
    %5 = arith.addf %2, %4 : vector<8x512xf32>
    %6 = math.tanh %5 : vector<8x512xf32>
    %cst_5 = arith.constant 1.57079637 : f32
    %7 = vector.broadcast %cst_5 : f32 to vector<8x512xf32>
    %8 = arith.mulf %6, %7 : vector<8x512xf32>
    %c0_6 = arith.constant 0 : index
    %c0_7 = arith.constant 0 : index
    %9 = vector.load %arg4[%c0_6, %c0_7] : memref<8x1xf32, #tpu.memory_space<vmem>>, vector<8x1xf32>
    %10 = vector.broadcast %9 : vector<8x1xf32> to vector<8x512xf32>
    %11 = arith.addf %8, %10 : vector<8x512xf32>
    %12 = math.cos %11 : vector<8x512xf32>
    %cst_8 = arith.constant 1.57079637 : f32
    %13 = vector.broadcast %cst_8 : f32 to vector<8x512xf32>
    %14 = arith.mulf %12, %13 : vector<8x512xf32>
    %c0_9 = arith.constant 0 : index
    %c0_10 = arith.constant 0 : index
    %15 = vector.load %arg5[%c0_9, %c0_10] : memref<8x1xf32, #tpu.memory_space<vmem>>, vector<8x1xf32>
    %16 = vector.broadcast %15 : vector<8x1xf32> to vector<8x512xf32>
    %17 = arith.addf %14, %16 : vector<8x512xf32>
    %18 = math.cos %17 : vector<8x512xf32>
    %c0_11 = arith.constant 0 : index
    %c0_12 = arith.constant 0 : index
    %19 = vector.load %arg6[%c0_11, %c0_12] : memref<8x16xf32, #tpu.memory_space<vmem>>, vector<8x16xf32>
    %cst_13 = arith.constant dense<0.000000e+00> : vector<512x16xf32>
    %20 = tpu.matmul %18, %19, %cst_13 {dimension_numbers = #tpu.dot_dimension_numbers<[0], [0], [1], [1], [0, 1, 1, 1], [], []>} : vector<8x512xf32>, vector<8x16xf32>, vector<512x16xf32> -> vector<512x16xf32>
    %c0_14 = arith.constant 0 : index
    %c0_15 = arith.constant 0 : index
    %21 = vector.load %arg7[%c0_14, %c0_15] : memref<1x16xf32, #tpu.memory_space<vmem>>, vector<1x16xf32>
    %22 = vector.broadcast %21 : vector<1x16xf32> to vector<512x16xf32>
    %23 = arith.addf %20, %22 : vector<512x16xf32>
    %c0_16 = arith.constant 0 : index
    %c0_17 = arith.constant 0 : index
    %24 = vector.load %arg8[%c0_16, %c0_17] : memref<512x16xf32, #tpu.memory_space<vmem>>, vector<512x16xf32>
    tpu.vector_store %arg8[%c0_16, %c0_17], %23 {strides = array<i32>} : memref<512x16xf32, #tpu.memory_space<vmem>>, vector<512x16xf32>,
    return
  }
  func.func @transform_0(%arg0: i32) -> (i32, i32) {
    %c0_i32 = arith.constant 0 : i32
    %c0_i32_0 = arith.constant 0 : i32
    return %arg0, %c0_i32 : i32, i32
  }
  func.func @transform_1(%arg0: i32) -> (i32, i32) {
    %c0_i32 = arith.constant 0 : i32
    %c0_i32_0 = arith.constant 0 : i32
    %c0_i32_1 = arith.constant 0 : i32
    return %c0_i32, %c0_i32_0 : i32, i32
  }
  func.func @transform_2(%arg0: i32) -> (i32, i32) {
    %c0_i32 = arith.constant 0 : i32
    %c0_i32_0 = arith.constant 0 : i32
    %c0_i32_1 = arith.constant 0 : i32
    return %c0_i32, %c0_i32_0 : i32, i32
  }
  func.func @transform_3(%arg0: i32) -> (i32, i32) {
    %c0_i32 = arith.constant 0 : i32
    %c0_i32_0 = arith.constant 0 : i32
    %c0_i32_1 = arith.constant 0 : i32
    return %c0_i32, %c0_i32_0 : i32, i32
  }
  func.func @transform_4(%arg0: i32) -> (i32, i32) {
    %c0_i32 = arith.constant 0 : i32
    %c0_i32_0 = arith.constant 0 : i32
    %c0_i32_1 = arith.constant 0 : i32
    return %c0_i32, %c0_i32_0 : i32, i32
  }
  func.func @transform_5(%arg0: i32) -> (i32, i32) {
    %c0_i32 = arith.constant 0 : i32
    %c0_i32_0 = arith.constant 0 : i32
    %c0_i32_1 = arith.constant 0 : i32
    return %c0_i32, %c0_i32_0 : i32, i32
  }
  func.func @transform_6(%arg0: i32) -> (i32, i32) {
    %c0_i32 = arith.constant 0 : i32
    %c0_i32_0 = arith.constant 0 : i32
    %c0_i32_1 = arith.constant 0 : i32
    return %c0_i32, %c0_i32_0 : i32, i32
  }
  func.func @transform_7(%arg0: i32) -> (i32, i32) {
    %c0_i32 = arith.constant 0 : i32
    %c0_i32_0 = arith.constant 0 : i32
    return %arg0, %c0_i32 : i32, i32
  }
}

</mosaic_0001>

<llo_original>
// kernel: tpu_custom_call.1
$region0: #{tpu_custom_call.1}
  #allocation0 [shape = 'u32[]', space=smem, size = 0x4, offset = 0x4, fixed_abs, tag = 'smem constant byte address 0x4 - core index']
  #allocation1 [shape = 'u32[144,128]{1,0:T(1,128)}', space=vmem, size = 0x12000, scoped, tag = 'internal scratch']
  %s0 = inlined_call_operand.vmem [shape: f32[512,16], index: 0, kind: input, shape index: {}]
  %s1 = inlined_call_operand.vmem [shape: f32[8,16], index: 1, kind: input, shape index: {}]
  %s2 = inlined_call_operand.vmem [shape: f32[8,1], index: 2, kind: input, shape index: {}]
  %s3 = inlined_call_operand.vmem [shape: f32[8,1], index: 3, kind: input, shape index: {}]
  %s4 = inlined_call_operand.vmem [shape: f32[8,1], index: 4, kind: input, shape index: {}]
  %s5 = inlined_call_operand.vmem [shape: f32[8,16], index: 5, kind: input, shape index: {}]
  %s6 = inlined_call_operand.vmem [shape: f32[1,16], index: 6, kind: input, shape index: {}]
  %s7 = inlined_call_operand.vmem [shape: f32[512,16], index: 7, kind: output, shape index: {}]
  %s8 = sld [smem:[#allocation0]]
  $region38: #{tpu_custom_call.1} parent=0
    _
  %s10 = ssub.s32 1, %s8
  %s11 = scalar_select 0, %s10, %s8
  // Predicated region
  $region2: #{tpu_custom_call.1} parent=0 // pred_check
    _
  $region3: #{tpu_custom_call.1} parent=0 // pred_check_branch
    %13 = sbr.rel (0) target = $region5
  $region4: #{tpu_custom_call.1} parent=0 // pred_region
    _
  $region5: #{tpu_custom_call.1} parent=0 // pred_fallthru
    _
  // Predicated region
  $region6: #{tpu_custom_call.1} parent=0 // pred_check
    _
  $region7: #{tpu_custom_call.1} parent=0 // pred_check_branch
    %15 = sbr.rel (0) target = $region9
  $region8: #{tpu_custom_call.1} parent=0 // pred_region
    _
  $region9: #{tpu_custom_call.1} parent=0 // pred_fallthru
    _
  // Predicated region
  $region10: #{tpu_custom_call.1} parent=0 // pred_check
    _
  $region11: #{tpu_custom_call.1} parent=0 // pred_check_branch
    %17 = sbr.rel (0) target = $region13
  $region12: #{tpu_custom_call.1} parent=0 // pred_region
    _
  $region13: #{tpu_custom_call.1} parent=0 // pred_fallthru
    _
  // Predicated region
  $region14: #{tpu_custom_call.1} parent=0 // pred_check
    _
  $region15: #{tpu_custom_call.1} parent=0 // pred_check_branch
    %19 = sbr.rel (0) target = $region17
  $region16: #{tpu_custom_call.1} parent=0 // pred_region
    _
  $region17: #{tpu_custom_call.1} parent=0 // pred_fallthru
    _
  // Predicated region
  $region18: #{tpu_custom_call.1} parent=0 // pred_check
    _
  $region19: #{tpu_custom_call.1} parent=0 // pred_check_branch
    %21 = sbr.rel (0) target = $region21
  $region20: #{tpu_custom_call.1} parent=0 // pred_region
    _
  $region21: #{tpu_custom_call.1} parent=0 // pred_fallthru
    _
  // Predicated region
  $region22: #{tpu_custom_call.1} parent=0 // pred_check
    _
  $region23: #{tpu_custom_call.1} parent=0 // pred_check_branch
    %23 = sbr.rel (0) target = $region25
  $region24: #{tpu_custom_call.1} parent=0 // pred_region
    _
  $region25: #{tpu_custom_call.1} parent=0 // pred_fallthru
    _
  // Predicated region
  $region26: #{tpu_custom_call.1} parent=0 // pred_check
    _
  $region27: #{tpu_custom_call.1} parent=0 // pred_check_branch
    %25 = sbr.rel (0) target = $region29
  $region28: #{tpu_custom_call.1} parent=0 // pred_region
    _
  $region29: #{tpu_custom_call.1} parent=0 // pred_fallthru
    _
  %v26 = vld [vmem:[%s1] sm:$0xff]
  %v27 = vld [vmem:[%s0] sm:$0xff]
  %v28 = vld [vmem:[%s0 + $0x8] sm:$0xff]
  %v29 = vld [vmem:[%s0 + $0x10] sm:$0xff]
  %v30 = vld [vmem:[%s0 + $0x18] sm:$0xff]
  %v31 = vld [vmem:[%s0 + $0x20] sm:$0xff]
  %v32 = vld [vmem:[%s0 + $0x28] sm:$0xff]
  %v33 = vld [vmem:[%s0 + $0x30] sm:$0xff]
  %v34 = vld [vmem:[%s0 + $0x38] sm:$0xff]
  %v35 = vld [vmem:[%s0 + $0x40] sm:$0xff]
  %v36 = vld [vmem:[%s0 + $0x48] sm:$0xff]
  %v37 = vld [vmem:[%s0 + $0x50] sm:$0xff]
  %v38 = vld [vmem:[%s0 + $0x58] sm:$0xff]
  %v39 = vld [vmem:[%s0 + $0x60] sm:$0xff]
  %v40 = vld [vmem:[%s0 + $0x68] sm:$0xff]
  %v41 = vld [vmem:[%s0 + $0x70] sm:$0xff]
  %v42 = vld [vmem:[%s0 + $0x78] sm:$0xff]
  %v43 = vld [vmem:[%s0 + $0x80] sm:$0xff]
  %v44 = vld [vmem:[%s0 + $0x88] sm:$0xff]
  %v45 = vld [vmem:[%s0 + $0x90] sm:$0xff]
  %v46 = vld [vmem:[%s0 + $0x98] sm:$0xff]
  %v47 = vld [vmem:[%s0 + $0xa0] sm:$0xff]
  %v48 = vld [vmem:[%s0 + $0xa8] sm:$0xff]
  %v49 = vld [vmem:[%s0 + $0xb0] sm:$0xff]
  %v50 = vld [vmem:[%s0 + $0xb8] sm:$0xff]
  %v51 = vld [vmem:[%s0 + $0xc0] sm:$0xff]
  %v52 = vld [vmem:[%s0 + $0xc8] sm:$0xff]
  %v53 = vld [vmem:[%s0 + $0xd0] sm:$0xff]
  %v54 = vld [vmem:[%s0 + $0xd8] sm:$0xff]
  %v55 = vld [vmem:[%s0 + $0xe0] sm:$0xff]
  %v56 = vld [vmem:[%s0 + $0xe8] sm:$0xff]
  %v57 = vld [vmem:[%s0 + $0xf0] sm:$0xff]
  %v58 = vld [vmem:[%s0 + $0xf8] sm:$0xff]
  %v59 = vld [vmem:[%s0 + $0x100] sm:$0xff]
  %v60 = vld [vmem:[%s0 + $0x108] sm:$0xff]
  %v61 = vld [vmem:[%s0 + $0x110] sm:$0xff]
  %v62 = vld [vmem:[%s0 + $0x118] sm:$0xff]
  %v63 = vld [vmem:[%s0 + $0x120] sm:$0xff]
  %v64 = vld [vmem:[%s0 + $0x128] sm:$0xff]
  %v65 = vld [vmem:[%s0 + $0x130] sm:$0xff]
  %v66 = vld [vmem:[%s0 + $0x138] sm:$0xff]
  %v67 = vld [vmem:[%s0 + $0x140] sm:$0xff]
  %v68 = vld [vmem:[%s0 + $0x148] sm:$0xff]
  %v69 = vld [vmem:[%s0 + $0x150] sm:$0xff]
  %v70 = vld [vmem:[%s0 + $0x158] sm:$0xff]
  %v71 = vld [vmem:[%s0 + $0x160] sm:$0xff]
  %v72 = vld [vmem:[%s0 + $0x168] sm:$0xff]
  %v73 = vld [vmem:[%s0 + $0x170] sm:$0xff]
  %v74 = vld [vmem:[%s0 + $0x178] sm:$0xff]
  %v75 = vld [vmem:[%s0 + $0x180] sm:$0xff]
  %v76 = vld [vmem:[%s0 + $0x188] sm:$0xff]
  %v77 = vld [vmem:[%s0 + $0x190] sm:$0xff]
  %v78 = vld [vmem:[%s0 + $0x198] sm:$0xff]
  %v79 = vld [vmem:[%s0 + $0x1a0] sm:$0xff]
  %v80 = vld [vmem:[%s0 + $0x1a8] sm:$0xff]
  %v81 = vld [vmem:[%s0 + $0x1b0] sm:$0xff]
  %v82 = vld [vmem:[%s0 + $0x1b8] sm:$0xff]
  %v83 = vld [vmem:[%s0 + $0x1c0] sm:$0xff]
  %v84 = vld [vmem:[%s0 + $0x1c8] sm:$0xff]
  %v85 = vld [vmem:[%s0 + $0x1d0] sm:$0xff]
  %v86 = vld [vmem:[%s0 + $0x1d8] sm:$0xff]
  %v87 = vld [vmem:[%s0 + $0x1e0] sm:$0xff]
  %v88 = vld [vmem:[%s0 + $0x1e8] sm:$0xff]
  %v89 = vld [vmem:[%s0 + $0x1f0] sm:$0xff]
  %v90 = vld [vmem:[%s0 + $0x1f8] sm:$0xff]
  %v91 = vld [vmem:[%s2] sm:$0xff]
  %93 = vset.pattern.permute.xlu0 0
  %94 = vperm.xlu0 %93, %v91
  %v95 = vpop.permute.xlu0 %94
  %vm97 = vcmask 130048
  %v99 = vsel %vm97, %v26, 0
  %v102 = vsel %vm97, %v27, 0
  %v105 = vsel %vm97, %v28, 0
  %v108 = vsel %vm97, %v29, 0
  %v111 = vsel %vm97, %v30, 0
  %v114 = vsel %vm97, %v31, 0
  %v117 = vsel %vm97, %v32, 0
  %v120 = vsel %vm97, %v33, 0
  %v123 = vsel %vm97, %v34, 0
  %v126 = vsel %vm97, %v35, 0
  %v129 = vsel %vm97, %v36, 0
  %v132 = vsel %vm97, %v37, 0
  %v135 = vsel %vm97, %v38, 0
  %v138 = vsel %vm97, %v39, 0
  %v141 = vsel %vm97, %v40, 0
  %v144 = vsel %vm97, %v41, 0
  %v147 = vsel %vm97, %v42, 0
  %v150 = vsel %vm97, %v43, 0
  %v153 = vsel %vm97, %v44, 0
  %v156 = vsel %vm97, %v45, 0
  %v159 = vsel %vm97, %v46, 0
  %v162 = vsel %vm97, %v47, 0
  %v165 = vsel %vm97, %v48, 0
  %v168 = vsel %vm97, %v49, 0
  %v171 = vsel %vm97, %v50, 0
  %v174 = vsel %vm97, %v51, 0
  %v177 = vsel %vm97, %v52, 0
  %v180 = vsel %vm97, %v53, 0
  %v183 = vsel %vm97, %v54, 0
  %v186 = vsel %vm97, %v55, 0
  %v189 = vsel %vm97, %v56, 0
  %v192 = vsel %vm97, %v57, 0
  %v195 = vsel %vm97, %v58, 0
  %v198 = vsel %vm97, %v59, 0
  %v201 = vsel %vm97, %v60, 0
  %v204 = vsel %vm97, %v61, 0
  %v207 = vsel %vm97, %v62, 0
  %v210 = vsel %vm97, %v63, 0
  %v213 = vsel %vm97, %v64, 0
  %v216 = vsel %vm97, %v65, 0
  %v219 = vsel %vm97, %v66, 0
  %v222 = vsel %vm97, %v67, 0
  %v225 = vsel %vm97, %v68, 0
  %v228 = vsel %vm97, %v69, 0
  %v231 = vsel %vm97, %v70, 0
  %v234 = vsel %vm97, %v71, 0
  %v237 = vsel %vm97, %v72, 0
  %v240 = vsel %vm97, %v73, 0
  %v243 = vsel %vm97, %v74, 0
  %v246 = vsel %vm97, %v75, 0
  %v249 = vsel %vm97, %v76, 0
  %v252 = vsel %vm97, %v77, 0
  %v255 = vsel %vm97, %v78, 0
  %v258 = vsel %vm97, %v79, 0
  %v261 = vsel %vm97, %v80, 0
  %v264 = vsel %vm97, %v81, 0
  %v267 = vsel %vm97, %v82, 0
  %v270 = vsel %vm97, %v83, 0
  %v273 = vsel %vm97, %v84, 0
  %v276 = vsel %vm97, %v85, 0
  %v279 = vsel %vm97, %v86, 0
  %v282 = vsel %vm97, %v87, 0
  %v285 = vsel %vm97, %v88, 0
  %v288 = vsel %vm97, %v89, 0
  %v291 = vsel %vm97, %v90, 0
  %293 = vmatprep.subr.mxu0 0.0
  %294 = vmatpush1.xpose.msra.mxu0 %v147
  %295 = vmatprep.subr.mxu0 0.0
  %296 = vmatpush1.xpose.msra.mxu0 %v144
  %297 = vmatprep.subr.mxu0 0.0
  %298 = vmatpush1.xpose.msra.mxu0 %v141
  %299 = vmatprep.subr.mxu0 0.0
  %300 = vmatpush1.xpose.msra.mxu0 %v138
  %301 = vmatprep.subr.mxu0 0.0
  %302 = vmatpush1.xpose.msra.mxu0 %v135
  %303 = vmatprep.subr.mxu0 0.0
  %304 = vmatpush1.xpose.msra.mxu0 %v132
  %305 = vmatprep.subr.mxu0 0.0
  %306 = vmatpush1.xpose.msra.mxu0 %v129
  %307 = vmatprep.subr.mxu0 0.0
  %308 = vmatpush1.xpose.msra.mxu0 %v126
  %309 = vmatprep.subr.mxu0 0.0
  %310 = vmatpush1.xpose.msra.mxu0 %v123
  %311 = vmatprep.subr.mxu0 0.0
  %312 = vmatpush1.xpose.msra.mxu0 %v120
  %313 = vmatprep.subr.mxu0 0.0
  %314 = vmatpush1.xpose.msra.mxu0 %v117
  %315 = vmatprep.subr.mxu0 0.0
  %316 = vmatpush1.xpose.msra.mxu0 %v114
  %317 = vmatprep.subr.mxu0 0.0
  %318 = vmatpush1.xpose.msra.mxu0 %v111
  %319 = vmatprep.subr.mxu0 0.0
  %320 = vmatpush1.xpose.msra.mxu0 %v108
  %321 = vmatprep.subr.mxu0 0.0
  %322 = vmatpush1.xpose.msra.mxu0 %v105
  %323 = vmatprep.subr.mxu0 0.0
  %324 = vmatpush1.xpose.msra.mxu0 %v102
  %325 = vmatprep.subr.mxu0 0.0
  %326 = vmatpush2.xpose.msra.mxu0 %v195
  %327 = vmatprep.subr.mxu0 0.0
  %328 = vmatpush2.xpose.msra.mxu0 %v192
  %329 = vmatprep.subr.mxu0 0.0
  %330 = vmatpush2.xpose.msra.mxu0 %v189
  %331 = vmatprep.subr.mxu0 0.0
  %332 = vmatpush2.xpose.msra.mxu0 %v186
  %333 = vmatprep.subr.mxu0 0.0
  %334 = vmatpush2.xpose.msra.mxu0 %v183
  %335 = vmatprep.subr.mxu0 0.0
  %336 = vmatpush2.xpose.msra.mxu0 %v180
  %337 = vmatprep.subr.mxu0 0.0
  %338 = vmatpush2.xpose.msra.mxu0 %v177
  %339 = vmatprep.subr.mxu0 0.0
  %340 = vmatpush2.xpose.msra.mxu0 %v174
  %341 = vmatprep.subr.mxu0 0.0
  %342 = vmatpush2.xpose.msra.mxu0 %v171
  %343 = vmatprep.subr.mxu0 0.0
  %344 = vmatpush2.xpose.msra.mxu0 %v168
  %345 = vmatprep.subr.mxu0 0.0
  %346 = vmatpush2.xpose.msra.mxu0 %v165
  %347 = vmatprep.subr.mxu0 0.0
  %348 = vmatpush2.xpose.msra.mxu0 %v162
  %349 = vmatprep.subr.mxu0 0.0
  %350 = vmatpush2.xpose.msra.mxu0 %v159
  %351 = vmatprep.subr.mxu0 0.0
  %352 = vmatpush2.xpose.msra.mxu0 %v156
  %353 = vmatprep.subr.mxu0 0.0
  %354 = vmatpush2.xpose.msra.mxu0 %v153
  %355 = vmatprep.subr.mxu0 0.0
  %356 = vmatpush2.xpose.msra.mxu0 %v150
  %357 = vmatprep.mubr.f32.mxu0 0.0
  %358 = vmatmul.mubr.f32.gmra.mxu0 %v99
  %v359 = vpop.f32.mrf.mxu0
  %v360 = vadd.f32 %v95, %v359
  %v361 = vpop.f32.mrf.mxu0
  %v362 = vadd.f32 %v95, %v361
  %363 = vdwg.mxu0
  %364 = vmatprep.subr.mxu0 0.0
  %365 = vmatpush1.xpose.msra.mxu0 %v243
  %366 = vmatprep.subr.mxu0 0.0
  %367 = vmatpush1.xpose.msra.mxu0 %v240
  %368 = vmatprep.subr.mxu0 0.0
  %369 = vmatpush1.xpose.msra.mxu0 %v237
  %370 = vmatprep.subr.mxu0 0.0
  %371 = vmatpush1.xpose.msra.mxu0 %v234
  %372 = vmatprep.subr.mxu0 0.0
  %373 = vmatpush1.xpose.msra.mxu0 %v231
  %374 = vmatprep.subr.mxu0 0.0
  %375 = vmatpush1.xpose.msra.mxu0 %v228
  %376 = vmatprep.subr.mxu0 0.0
  %377 = vmatpush1.xpose.msra.mxu0 %v225
  %378 = vmatprep.subr.mxu0 0.0
  %379 = vmatpush1.xpose.msra.mxu0 %v222
  %380 = vmatprep.subr.mxu0 0.0
  %381 = vmatpush1.xpose.msra.mxu0 %v219
  %382 = vmatprep.subr.mxu0 0.0
  %383 = vmatpush1.xpose.msra.mxu0 %v216
  %384 = vmatprep.subr.mxu0 0.0
  %385 = vmatpush1.xpose.msra.mxu0 %v213
  %386 = vmatprep.subr.mxu0 0.0
  %387 = vmatpush1.xpose.msra.mxu0 %v210
  %388 = vmatprep.subr.mxu0 0.0
  %389 = vmatpush1.xpose.msra.mxu0 %v207
  %390 = vmatprep.subr.mxu0 0.0
  %391 = vmatpush1.xpose.msra.mxu0 %v204
  %392 = vmatprep.subr.mxu0 0.0
  %393 = vmatpush1.xpose.msra.mxu0 %v201
  %394 = vmatprep.subr.mxu0 0.0
  %395 = vmatpush1.xpose.msra.mxu0 %v198
  %396 = vmatprep.subr.mxu0 0.0
  %397 = vmatpush2.xpose.msra.mxu0 %v291
  %398 = vmatprep.subr.mxu0 0.0
  %399 = vmatpush2.xpose.msra.mxu0 %v288
  %400 = vmatprep.subr.mxu0 0.0
  %401 = vmatpush2.xpose.msra.mxu0 %v285
  %402 = vmatprep.subr.mxu0 0.0
  %403 = vmatpush2.xpose.msra.mxu0 %v282
  %404 = vmatprep.subr.mxu0 0.0
  %405 = vmatpush2.xpose.msra.mxu0 %v279
  %406 = vmatprep.subr.mxu0 0.0
  %407 = vmatpush2.xpose.msra.mxu0 %v276
  %408 = vmatprep.subr.mxu0 0.0
  %409 = vmatpush2.xpose.msra.mxu0 %v273
  %410 = vmatprep.subr.mxu0 0.0
  %411 = vmatpush2.xpose.msra.mxu0 %v270
  %412 = vmatprep.subr.mxu0 0.0
  %413 = vmatpush2.xpose.msra.mxu0 %v267
  %414 = vmatprep.subr.mxu0 0.0
  %415 = vmatpush2.xpose.msra.mxu0 %v264
  %416 = vmatprep.subr.mxu0 0.0
  %417 = vmatpush2.xpose.msra.mxu0 %v261
  %418 = vmatprep.subr.mxu0 0.0
  %419 = vmatpush2.xpose.msra.mxu0 %v258
  %420 = vmatprep.subr.mxu0 0.0
  %421 = vmatpush2.xpose.msra.mxu0 %v255
  %422 = vmatprep.subr.mxu0 0.0
  %423 = vmatpush2.xpose.msra.mxu0 %v252
  %424 = vmatprep.subr.mxu0 0.0
  %425 = vmatpush2.xpose.msra.mxu0 %v249
  %426 = vmatprep.subr.mxu0 0.0
  %427 = vmatpush2.xpose.msra.mxu0 %v246
  %428 = vmatprep.mubr.f32.mxu0 0.0
  %429 = vmatmul.mubr.f32.gmra.mxu0 %v99
  %v430 = vpop.f32.mrf.mxu0
  %v431 = vadd.f32 %v95, %v430
  %v432 = vpop.f32.mrf.mxu0
  %v433 = vadd.f32 %v95, %v432
  %434 = vdwg.mxu0
  %v435 = vtanh.pop %v360
  %v436 = vtanh.pop %v362
  %v437 = vtanh.pop %v431
  %v438 = vtanh.pop %v433
  %v439 = vmul.f32 %v435, 1.5707964
  %v440 = vmul.f32 %v436, 1.5707964
  %v441 = vmul.f32 %v437, 1.5707964
  %v442 = vmul.f32 %v438, 1.5707964
  %v443 = vld [vmem:[%s3] sm:$0xff]
  %445 = vset.pattern.permute.xlu0 0
  %446 = vperm.xlu0 %445, %v443
  %v447 = vpop.permute.xlu0 %446
  %v449 = vadd.f32 %v439, %v447
  %v450 = vadd.f32 %v440, %v447
  %v451 = vadd.f32 %v441, %v447
  %v452 = vadd.f32 %v442, %v447
  %v453 = vand.u32 2147483647, %v449
  %vm454 = vcmp.le.f32.partialorder %v453, 0.7853982
  %vm455 = vcmp.lt.s32.totalorder %v449, 0
  %v456 = vand.u32 %v449, 2139095040
  %v457 = vshrl.u32 %v456, 23
  %v458 = vsub.s32 %v457, 127
  %v459 = vand.u32 2147483647, %v449
  %v460 = vand.u32 %v459, 8388607
  %v461 = vor.u32 %v460, 8388608
  %v462 = vsub.s32 0, %v461
  %v463 = vadd.s32 %v458, 1
  %vm464 = vcmp.gt.s32.totalorder %v463, 0
  %v465 = vsel %vm464, %v463, 0
  %v466 = vshrl.u32 %v465, 5
  %v467 = vand.u32 %v465, 31
  %v468 = vsub.s32 32, %v467
  %v469 = vshrl.u32 683565275, %v468
  %v470 = vshll.u32 683565275, %v467
  %v471 = vshrl.u32 2475754826, %v468
  %v472 = vor.u32 %v470, %v471
  %v473 = vshll.u32 2475754826, %v467
  %v474 = vshrl.u32 2131351028, %v468
  %v475 = vor.u32 %v473, %v474
  %v476 = vshll.u32 2131351028, %v467
  %v477 = vshrl.u32 2102212464, %v468
  %v478 = vor.u32 %v476, %v477
  %v479 = vshll.u32 2102212464, %v467
  %v480 = vshrl.u32 920167782, %v468
  %v481 = vor.u32 %v479, %v480
  %v482 = vshll.u32 920167782, %v467
  %v483 = vshrl.u32 1326507024, %v468
  %v484 = vor.u32 %v482, %v483
  %vm485 = vcmp.lt.s32.totalorder %v466, 1
  %vm486 = vcmp.lt.s32.totalorder %v466, 2
  %vm487 = vcmp.lt.s32.totalorder %v466, 3
  %vm488 = vcmp.lt.s32.totalorder %v466, 4
  %v489 = vsel %vm485, %v469, %v472
  %v490 = vsel %vm488, %v478, 2102212464
  %v491 = vsel %vm487, %v475, %v490
  %v492 = vsel %vm486, %v489, %v491
  %v493 = vsel %vm485, %v472, %v475
  %v494 = vsel %vm488, %v481, 920167782
  %v495 = vsel %vm487, %v478, %v494
  %v496 = vsel %vm486, %v493, %v495
  %v497 = vsel %vm485, %v475, %v478
  %v498 = vsel %vm488, %v484, 1326507024
  %v499 = vsel %vm487, %v481, %v498
  %v500 = vsel %vm486, %v497, %v499
  %v501 = vshll.u32 %v461, 8
  %v502 = vmul.u32.u64.compose %v501, %v500
  %v503 = vextract.low.u32 %v502
  %v504 = vextract.high.u32 %v502
  %v505 = vmul.u32.u64.compose %v501, %v496
  %v506 = vextract.low.u32 %v505
  %v507 = vextract.high.u32 %v505
  %v508 = vmul.u32 %v501, %v492
  %v509 = vadd.s32 %v504, %v506
  %vm510 = vc.u32 %v504, %v506
  %v511 = vadd.s32 %v507, 1
  %v512 = vsel %vm510, %v511, %v507
  %v513 = vadd.s32 %v508, %v512
  %v514 = vadd.s32 %v513, 536870912
  %v515 = vshrl.u32 %v514, 30
  %v516 = vshll.u32 %v515, 30
  %v517 = vsub.s32 %v513, %v516
  %vm518 = vcmp.lt.s32.totalorder %v517, 0
  %v519 = vsub.s32 0, %v517
  %v520 = vsel %vm518, %v519, %v517
  %v521 = vclz %v520
  %v522 = vsub.s32 %v521, 2
  %vm523 = vcmp.gt.s32.totalorder 0, %v522
  %v524 = vsel %vm523, 0, %v522
  %v525 = vsub.s32 32, %v524
  %v526 = vshll.u32 %v517, %v524
  %v527 = vshrl.u32 %v509, %v525
  %v528 = vor.u32 %v526, %v527
  %v529 = vsub.s32 4294967266, %v524
  %v530 = vadd.s32 %v529, 127
  %v531 = vshll.u32 %v530, 23
  %v532 = vor.u32 4788187, %v531
  %v533 = vand.u32 2147483647, %v532
  %v535 = vcvt.s32.f32 %v528
  %v536 = vmul.f32 %v535, %v533
  %v537 = vxor.u32 %v536, 2147483648
  %v538 = vsel %vm455, %v537, %v536
  %v539 = vsub.s32 4, %v515
  %v540 = vsel %vm455, %v539, %v515
  %v541 = vsel %vm454, %v449, %v538
  %v542 = vsel %vm454, 0, %v540
  %v543 = vcosq.f32.pop %v541
  %v544 = vsinq.f32.pop %v541
  %vm545 = vweird.f32 %v449
  %v546 = vand.u32 %v542, 3
  %vm547 = vcmp.lt.s32.totalorder %v546, 2
  %vm548 = vcmp.eq.s32.totalorder %v546, 0
  %v549 = vxor.u32 %v544, 2147483648
  %v550 = vsel %vm548, %v543, %v549
  %vm551 = vcmp.eq.s32.totalorder %v546, 2
  %v552 = vxor.u32 %v543, 2147483648
  %v553 = vsel %vm551, %v552, %v544
  %v554 = vsel %vm547, %v550, %v553
  %v555 = vsel %vm545, nan, %v554
  %v556 = vand.u32 2147483647, %v450
  %vm557 = vcmp.le.f32.partialorder %v556, 0.7853982
  %vm558 = vcmp.lt.s32.totalorder %v450, 0
  %v559 = vand.u32 %v450, 2139095040
  %v560 = vshrl.u32 %v559, 23
  %v561 = vsub.s32 %v560, 127
  %v562 = vand.u32 2147483647, %v450
  %v563 = vand.u32 %v562, 8388607
  %v564 = vor.u32 %v563, 8388608
  %v565 = vsub.s32 0, %v564
  %v566 = vadd.s32 %v561, 1
  %vm567 = vcmp.gt.s32.totalorder %v566, 0
  %v568 = vsel %vm567, %v566, 0
  %v569 = vshrl.u32 %v568, 5
  %v570 = vand.u32 %v568, 31
  %v571 = vsub.s32 32, %v570
  %v572 = vshrl.u32 683565275, %v571
  %v573 = vshll.u32 683565275, %v570
  %v574 = vshrl.u32 2475754826, %v571
  %v575 = vor.u32 %v573, %v574
  %v576 = vshll.u32 2475754826, %v570
  %v577 = vshrl.u32 2131351028, %v571
  %v578 = vor.u32 %v576, %v577
  %v579 = vshll.u32 2131351028, %v570
  %v580 = vshrl.u32 2102212464, %v571
  %v581 = vor.u32 %v579, %v580
  %v582 = vshll.u32 2102212464, %v570
  %v583 = vshrl.u32 920167782, %v571
  %v584 = vor.u32 %v582, %v583
  %v585 = vshll.u32 920167782, %v570
  %v586 = vshrl.u32 1326507024, %v571
  %v587 = vor.u32 %v585, %v586
  %vm588 = vcmp.lt.s32.totalorder %v569, 1
  %vm589 = vcmp.lt.s32.totalorder %v569, 2
  %vm590 = vcmp.lt.s32.totalorder %v569, 3
  %vm591 = vcmp.lt.s32.totalorder %v569, 4
  %v592 = vsel %vm588, %v572, %v575
  %v593 = vsel %vm591, %v581, 2102212464
  %v594 = vsel %vm590, %v578, %v593
  %v595 = vsel %vm589, %v592, %v594
  %v596 = vsel %vm588, %v575, %v578
  %v597 = vsel %vm591, %v584, 920167782
  %v598 = vsel %vm590, %v581, %v597
  %v599 = vsel %vm589, %v596, %v598
  %v600 = vsel %vm588, %v578, %v581
  %v601 = vsel %vm591, %v587, 1326507024
  %v602 = vsel %vm590, %v584, %v601
  %v603 = vsel %vm589, %v600, %v602
  %v604 = vshll.u32 %v564, 8
  %v605 = vmul.u32.u64.compose %v604, %v603
  %v606 = vextract.low.u32 %v605
  %v607 = vextract.high.u32 %v605
  %v608 = vmul.u32.u64.compose %v604, %v599
  %v609 = vextract.low.u32 %v608
  %v610 = vextract.high.u32 %v608
  %v611 = vmul.u32 %v604, %v595
  %v612 = vadd.s32 %v607, %v609
  %vm613 = vc.u32 %v607, %v609
  %v614 = vadd.s32 %v610, 1
  %v615 = vsel %vm613, %v614, %v610
  %v616 = vadd.s32 %v611, %v615
  %v617 = vadd.s32 %v616, 536870912
  %v618 = vshrl.u32 %v617, 30
  %v619 = vshll.u32 %v618, 30
  %v620 = vsub.s32 %v616, %v619
  %vm621 = vcmp.lt.s32.totalorder %v620, 0
  %v622 = vsub.s32 0, %v620
  %v623 = vsel %vm621, %v622, %v620
  %v624 = vclz %v623
  %v625 = vsub.s32 %v624, 2
  %vm626 = vcmp.gt.s32.totalorder 0, %v625
  %v627 = vsel %vm626, 0, %v625
  %v628 = vsub.s32 32, %v627
  %v629 = vshll.u32 %v620, %v627
  %v630 = vshrl.u32 %v612, %v628
  %v631 = vor.u32 %v629, %v630
  %v632 = vsub.s32 4294967266, %v627
  %v633 = vadd.s32 %v632, 127
  %v634 = vshll.u32 %v633, 23
  %v635 = vor.u32 4788187, %v634
  %v636 = vand.u32 2147483647, %v635
  %v638 = vcvt.s32.f32 %v631
  %v639 = vmul.f32 %v638, %v636
  %v640 = vxor.u32 %v639, 2147483648
  %v641 = vsel %vm558, %v640, %v639
  %v642 = vsub.s32 4, %v618
  %v643 = vsel %vm558, %v642, %v618
  %v644 = vsel %vm557, %v450, %v641
  %v645 = vsel %vm557, 0, %v643
  %v646 = vcosq.f32.pop %v644
  %v647 = vsinq.f32.pop %v644
  %vm648 = vweird.f32 %v450
  %v649 = vand.u32 %v645, 3
  %vm650 = vcmp.lt.s32.totalorder %v649, 2
  %vm651 = vcmp.eq.s32.totalorder %v649, 0
  %v652 = vxor.u32 %v647, 2147483648
  %v653 = vsel %vm651, %v646, %v652
  %vm654 = vcmp.eq.s32.totalorder %v649, 2
  %v655 = vxor.u32 %v646, 2147483648
  %v656 = vsel %vm654, %v655, %v647
  %v657 = vsel %vm650, %v653, %v656
  %v658 = vsel %vm648, nan, %v657
  %v659 = vand.u32 2147483647, %v451
  %vm660 = vcmp.le.f32.partialorder %v659, 0.7853982
  %vm661 = vcmp.lt.s32.totalorder %v451, 0
  %v662 = vand.u32 %v451, 2139095040
  %v663 = vshrl.u32 %v662, 23
  %v664 = vsub.s32 %v663, 127
  %v665 = vand.u32 2147483647, %v451
  %v666 = vand.u32 %v665, 8388607
  %v667 = vor.u32 %v666, 8388608
  %v668 = vsub.s32 0, %v667
  %v669 = vadd.s32 %v664, 1
  %vm670 = vcmp.gt.s32.totalorder %v669, 0
  %v671 = vsel %vm670, %v669, 0
  %v672 = vshrl.u32 %v671, 5
  %v673 = vand.u32 %v671, 31
  %v674 = vsub.s32 32, %v673
  %v675 = vshrl.u32 683565275, %v674
  %v676 = vshll.u32 683565275, %v673
  %v677 = vshrl.u32 2475754826, %v674
  %v678 = vor.u32 %v676, %v677
  %v679 = vshll.u32 2475754826, %v673
  %v680 = vshrl.u32 2131351028, %v674
  %v681 = vor.u32 %v679, %v680
  %v682 = vshll.u32 2131351028, %v673
  %v683 = vshrl.u32 2102212464, %v674
  %v684 = vor.u32 %v682, %v683
  %v685 = vshll.u32 2102212464, %v673
  %v686 = vshrl.u32 920167782, %v674
  %v687 = vor.u32 %v685, %v686
  %v688 = vshll.u32 920167782, %v673
  %v689 = vshrl.u32 1326507024, %v674
  %v690 = vor.u32 %v688, %v689
  %vm691 = vcmp.lt.s32.totalorder %v672, 1
  %vm692 = vcmp.lt.s32.totalorder %v672, 2
  %vm693 = vcmp.lt.s32.totalorder %v672, 3
  %vm694 = vcmp.lt.s32.totalorder %v672, 4
  %v695 = vsel %vm691, %v675, %v678
  %v696 = vsel %vm694, %v684, 2102212464
  %v697 = vsel %vm693, %v681, %v696
  %v698 = vsel %vm692, %v695, %v697
  %v699 = vsel %vm691, %v678, %v681
  %v700 = vsel %vm694, %v687, 920167782
  %v701 = vsel %vm693, %v684, %v700
  %v702 = vsel %vm692, %v699, %v701
  %v703 = vsel %vm691, %v681, %v684
  %v704 = vsel %vm694, %v690, 1326507024
  %v705 = vsel %vm693, %v687, %v704
  %v706 = vsel %vm692, %v703, %v705
  %v707 = vshll.u32 %v667, 8
  %v708 = vmul.u32.u64.compose %v707, %v706
  %v709 = vextract.low.u32 %v708
  %v710 = vextract.high.u32 %v708
  %v711 = vmul.u32.u64.compose %v707, %v702
  %v712 = vextract.low.u32 %v711
  %v713 = vextract.high.u32 %v711
  %v714 = vmul.u32 %v707, %v698
  %v715 = vadd.s32 %v710, %v712
  %vm716 = vc.u32 %v710, %v712
  %v717 = vadd.s32 %v713, 1
  %v718 = vsel %vm716, %v717, %v713
  %v719 = vadd.s32 %v714, %v718
  %v720 = vadd.s32 %v719, 536870912
  %v721 = vshrl.u32 %v720, 30
  %v722 = vshll.u32 %v721, 30
  %v723 = vsub.s32 %v719, %v722
  %vm724 = vcmp.lt.s32.totalorder %v723, 0
  %v725 = vsub.s32 0, %v723
  %v726 = vsel %vm724, %v725, %v723
  %v727 = vclz %v726
  %v728 = vsub.s32 %v727, 2
  %vm729 = vcmp.gt.s32.totalorder 0, %v728
  %v730 = vsel %vm729, 0, %v728
  %v731 = vsub.s32 32, %v730
  %v732 = vshll.u32 %v723, %v730
  %v733 = vshrl.u32 %v715, %v731
  %v734 = vor.u32 %v732, %v733
  %v735 = vsub.s32 4294967266, %v730
  %v736 = vadd.s32 %v735, 127
  %v737 = vshll.u32 %v736, 23
  %v738 = vor.u32 4788187, %v737
  %v739 = vand.u32 2147483647, %v738
  %v741 = vcvt.s32.f32 %v734
  %v742 = vmul.f32 %v741, %v739
  %v743 = vxor.u32 %v742, 2147483648
  %v744 = vsel %vm661, %v743, %v742
  %v745 = vsub.s32 4, %v721
  %v746 = vsel %vm661, %v745, %v721
  %v747 = vsel %vm660, %v451, %v744
  %v748 = vsel %vm660, 0, %v746
  %v749 = vcosq.f32.pop %v747
  %v750 = vsinq.f32.pop %v747
  %vm751 = vweird.f32 %v451
  %v752 = vand.u32 %v748, 3
  %vm753 = vcmp.lt.s32.totalorder %v752, 2
  %vm754 = vcmp.eq.s32.totalorder %v752, 0
  %v755 = vxor.u32 %v750, 2147483648
  %v756 = vsel %vm754, %v749, %v755
  %vm757 = vcmp.eq.s32.totalorder %v752, 2
  %v758 = vxor.u32 %v749, 2147483648
  %v759 = vsel %vm757, %v758, %v750
  %v760 = vsel %vm753, %v756, %v759
  %v761 = vsel %vm751, nan, %v760
  %v762 = vand.u32 2147483647, %v452
  %vm763 = vcmp.le.f32.partialorder %v762, 0.7853982
  %vm764 = vcmp.lt.s32.totalorder %v452, 0
  %v765 = vand.u32 %v452, 2139095040
  %v766 = vshrl.u32 %v765, 23
  %v767 = vsub.s32 %v766, 127
  %v768 = vand.u32 2147483647, %v452
  %v769 = vand.u32 %v768, 8388607
  %v770 = vor.u32 %v769, 8388608
  %v771 = vsub.s32 0, %v770
  %v772 = vadd.s32 %v767, 1
  %vm773 = vcmp.gt.s32.totalorder %v772, 0
  %v774 = vsel %vm773, %v772, 0
  %v775 = vshrl.u32 %v774, 5
  %v776 = vand.u32 %v774, 31
  %v777 = vsub.s32 32, %v776
  %v778 = vshrl.u32 683565275, %v777
  %v779 = vshll.u32 683565275, %v776
  %v780 = vshrl.u32 2475754826, %v777
  %v781 = vor.u32 %v779, %v780
  %v782 = vshll.u32 2475754826, %v776
  %v783 = vshrl.u32 2131351028, %v777
  %v784 = vor.u32 %v782, %v783
  %v785 = vshll.u32 2131351028, %v776
  %v786 = vshrl.u32 2102212464, %v777
  %v787 = vor.u32 %v785, %v786
  %v788 = vshll.u32 2102212464, %v776
  %v789 = vshrl.u32 920167782, %v777
  %v790 = vor.u32 %v788, %v789
  %v791 = vshll.u32 920167782, %v776
  %v792 = vshrl.u32 1326507024, %v777
  %v793 = vor.u32 %v791, %v792
  %vm794 = vcmp.lt.s32.totalorder %v775, 1
  %vm795 = vcmp.lt.s32.totalorder %v775, 2
  %vm796 = vcmp.lt.s32.totalorder %v775, 3
  %vm797 = vcmp.lt.s32.totalorder %v775, 4
  %v798 = vsel %vm794, %v778, %v781
  %v799 = vsel %vm797, %v787, 2102212464
  %v800 = vsel %vm796, %v784, %v799
  %v801 = vsel %vm795, %v798, %v800
  %v802 = vsel %vm794, %v781, %v784
  %v803 = vsel %vm797, %v790, 920167782
  %v804 = vsel %vm796, %v787, %v803
  %v805 = vsel %vm795, %v802, %v804
  %v806 = vsel %vm794, %v784, %v787
  %v807 = vsel %vm797, %v793, 1326507024
  %v808 = vsel %vm796, %v790, %v807
  %v809 = vsel %vm795, %v806, %v808
  %v810 = vshll.u32 %v770, 8
  %v811 = vmul.u32.u64.compose %v810, %v809
  %v812 = vextract.low.u32 %v811
  %v813 = vextract.high.u32 %v811
  %v814 = vmul.u32.u64.compose %v810, %v805
  %v815 = vextract.low.u32 %v814
  %v816 = vextract.high.u32 %v814
  %v817 = vmul.u32 %v810, %v801
  %v818 = vadd.s32 %v813, %v815
  %vm819 = vc.u32 %v813, %v815
  %v820 = vadd.s32 %v816, 1
  %v821 = vsel %vm819, %v820, %v816
  %v822 = vadd.s32 %v817, %v821
  %v823 = vadd.s32 %v822, 536870912
  %v824 = vshrl.u32 %v823, 30
  %v825 = vshll.u32 %v824, 30
  %v826 = vsub.s32 %v822, %v825
  %vm827 = vcmp.lt.s32.totalorder %v826, 0
  %v828 = vsub.s32 0, %v826
  %v829 = vsel %vm827, %v828, %v826
  %v830 = vclz %v829
  %v831 = vsub.s32 %v830, 2
  %vm832 = vcmp.gt.s32.totalorder 0, %v831
  %v833 = vsel %vm832, 0, %v831
  %v834 = vsub.s32 32, %v833
  %v835 = vshll.u32 %v826, %v833
  %v836 = vshrl.u32 %v818, %v834
  %v837 = vor.u32 %v835, %v836
  %v838 = vsub.s32 4294967266, %v833
  %v839 = vadd.s32 %v838, 127
  %v840 = vshll.u32 %v839, 23
  %v841 = vor.u32 4788187, %v840
  %v842 = vand.u32 2147483647, %v841
  %v844 = vcvt.s32.f32 %v837
  %v845 = vmul.f32 %v844, %v842
  %v846 = vxor.u32 %v845, 2147483648
  %v847 = vsel %vm764, %v846, %v845
  %v848 = vsub.s32 4, %v824
  %v849 = vsel %vm764, %v848, %v824
  %v850 = vsel %vm763, %v452, %v847
  %v851 = vsel %vm763, 0, %v849
  %v852 = vcosq.f32.pop %v850
  %v853 = vsinq.f32.pop %v850
  %vm854 = vweird.f32 %v452
  %v855 = vand.u32 %v851, 3
  %vm856 = vcmp.lt.s32.totalorder %v855, 2
  %vm857 = vcmp.eq.s32.totalorder %v855, 0
  %v858 = vxor.u32 %v853, 2147483648
  %v859 = vsel %vm857, %v852, %v858
  %vm860 = vcmp.eq.s32.totalorder %v855, 2
  %v861 = vxor.u32 %v852, 2147483648
  %v862 = vsel %vm860, %v861, %v853
  %v863 = vsel %vm856, %v859, %v862
  %v864 = vsel %vm854, nan, %v863
  %v865 = vmul.f32 %v555, 1.5707964
  %v866 = vmul.f32 %v658, 1.5707964
  %v867 = vmul.f32 %v761, 1.5707964
  %v868 = vmul.f32 %v864, 1.5707964
  %v869 = vld [vmem:[%s4] sm:$0xff]
  %871 = vset.pattern.permute.xlu0 0
  %872 = vperm.xlu0 %871, %v869
  %v873 = vpop.permute.xlu0 %872
  %v875 = vadd.f32 %v865, %v873
  %v876 = vadd.f32 %v866, %v873
  %v877 = vadd.f32 %v867, %v873
  %v878 = vadd.f32 %v868, %v873
  %v879 = vand.u32 2147483647, %v875
  %vm880 = vcmp.le.f32.partialorder %v879, 0.7853982
  %vm881 = vcmp.lt.s32.totalorder %v875, 0
  %v882 = vand.u32 %v875, 2139095040
  %v883 = vshrl.u32 %v882, 23
  %v884 = vsub.s32 %v883, 127
  %v885 = vand.u32 2147483647, %v875
  %v886 = vand.u32 %v885, 8388607
  %v887 = vor.u32 %v886, 8388608
  %v888 = vsub.s32 0, %v887
  %v889 = vadd.s32 %v884, 1
  %vm890 = vcmp.gt.s32.totalorder %v889, 0
  %v891 = vsel %vm890, %v889, 0
  %v892 = vshrl.u32 %v891, 5
  %v893 = vand.u32 %v891, 31
  %v894 = vsub.s32 32, %v893
  %v895 = vshrl.u32 683565275, %v894
  %v896 = vshll.u32 683565275, %v893
  %v897 = vshrl.u32 2475754826, %v894
  %v898 = vor.u32 %v896, %v897
  %v899 = vshll.u32 2475754826, %v893
  %v900 = vshrl.u32 2131351028, %v894
  %v901 = vor.u32 %v899, %v900
  %v902 = vshll.u32 2131351028, %v893
  %v903 = vshrl.u32 2102212464, %v894
  %v904 = vor.u32 %v902, %v903
  %v905 = vshll.u32 2102212464, %v893
  %v906 = vshrl.u32 920167782, %v894
  %v907 = vor.u32 %v905, %v906
  %v908 = vshll.u32 920167782, %v893
  %v909 = vshrl.u32 1326507024, %v894
  %v910 = vor.u32 %v908, %v909
  %vm911 = vcmp.lt.s32.totalorder %v892, 1
  %vm912 = vcmp.lt.s32.totalorder %v892, 2
  %vm913 = vcmp.lt.s32.totalorder %v892, 3
  %vm914 = vcmp.lt.s32.totalorder %v892, 4
  %v915 = vsel %vm911, %v895, %v898
  %v916 = vsel %vm914, %v904, 2102212464
  %v917 = vsel %vm913, %v901, %v916
  %v918 = vsel %vm912, %v915, %v917
  %v919 = vsel %vm911, %v898, %v901
  %v920 = vsel %vm914, %v907, 920167782
  %v921 = vsel %vm913, %v904, %v920
  %v922 = vsel %vm912, %v919, %v921
  %v923 = vsel %vm911, %v901, %v904
  %v924 = vsel %vm914, %v910, 1326507024
  %v925 = vsel %vm913, %v907, %v924
  %v926 = vsel %vm912, %v923, %v925
  %v927 = vshll.u32 %v887, 8
  %v928 = vmul.u32.u64.compose %v927, %v926
  %v929 = vextract.low.u32 %v928
  %v930 = vextract.high.u32 %v928
  %v931 = vmul.u32.u64.compose %v927, %v922
  %v932 = vextract.low.u32 %v931
  %v933 = vextract.high.u32 %v931
  %v934 = vmul.u32 %v927, %v918
  %v935 = vadd.s32 %v930, %v932
  %vm936 = vc.u32 %v930, %v932
  %v937 = vadd.s32 %v933, 1
  %v938 = vsel %vm936, %v937, %v933
  %v939 = vadd.s32 %v934, %v938
  %v940 = vadd.s32 %v939, 536870912
  %v941 = vshrl.u32 %v940, 30
  %v942 = vshll.u32 %v941, 30
  %v943 = vsub.s32 %v939, %v942
  %vm944 = vcmp.lt.s32.totalorder %v943, 0
  %v945 = vsub.s32 0, %v943
  %v946 = vsel %vm944, %v945, %v943
  %v947 = vclz %v946
  %v948 = vsub.s32 %v947, 2
  %vm949 = vcmp.gt.s32.totalorder 0, %v948
  %v950 = vsel %vm949, 0, %v948
  %v951 = vsub.s32 32, %v950
  %v952 = vshll.u32 %v943, %v950
  %v953 = vshrl.u32 %v935, %v951
  %v954 = vor.u32 %v952, %v953
  %v955 = vsub.s32 4294967266, %v950
  %v956 = vadd.s32 %v955, 127
  %v957 = vshll.u32 %v956, 23
  %v958 = vor.u32 4788187, %v957
  %v959 = vand.u32 2147483647, %v958
  %v961 = vcvt.s32.f32 %v954
  %v962 = vmul.f32 %v961, %v959
  %v963 = vxor.u32 %v962, 2147483648
  %v964 = vsel %vm881, %v963, %v962
  %v965 = vsub.s32 4, %v941
  %v966 = vsel %vm881, %v965, %v941
  %v967 = vsel %vm880, %v875, %v964
  %v968 = vsel %vm880, 0, %v966
  %v969 = vcosq.f32.pop %v967
  %v970 = vsinq.f32.pop %v967
  %vm971 = vweird.f32 %v875
  %v972 = vand.u32 %v968, 3
  %vm973 = vcmp.lt.s32.totalorder %v972, 2
  %vm974 = vcmp.eq.s32.totalorder %v972, 0
  %v975 = vxor.u32 %v970, 2147483648
  %v976 = vsel %vm974, %v969, %v975
  %vm977 = vcmp.eq.s32.totalorder %v972, 2
  %v978 = vxor.u32 %v969, 2147483648
  %v979 = vsel %vm977, %v978, %v970
  %v980 = vsel %vm973, %v976, %v979
  %v981 = vsel %vm971, nan, %v980
  %v982 = vand.u32 2147483647, %v876
  %vm983 = vcmp.le.f32.partialorder %v982, 0.7853982
  %vm984 = vcmp.lt.s32.totalorder %v876, 0
  %v985 = vand.u32 %v876, 2139095040
  %v986 = vshrl.u32 %v985, 23
  %v987 = vsub.s32 %v986, 127
  %v988 = vand.u32 2147483647, %v876
  %v989 = vand.u32 %v988, 8388607
  %v990 = vor.u32 %v989, 8388608
  %v991 = vsub.s32 0, %v990
  %v992 = vadd.s32 %v987, 1
  %vm993 = vcmp.gt.s32.totalorder %v992, 0
  %v994 = vsel %vm993, %v992, 0
  %v995 = vshrl.u32 %v994, 5
  %v996 = vand.u32 %v994, 31
  %v997 = vsub.s32 32, %v996
  %v998 = vshrl.u32 683565275, %v997
  %v999 = vshll.u32 683565275, %v996
  %v1000 = vshrl.u32 2475754826, %v997
  %v1001 = vor.u32 %v999, %v1000
  %v1002 = vshll.u32 2475754826, %v996
  %v1003 = vshrl.u32 2131351028, %v997
  %v1004 = vor.u32 %v1002, %v1003
  %v1005 = vshll.u32 2131351028, %v996
  %v1006 = vshrl.u32 2102212464, %v997
  %v1007 = vor.u32 %v1005, %v1006
  %v1008 = vshll.u32 2102212464, %v996
  %v1009 = vshrl.u32 920167782, %v997
  %v1010 = vor.u32 %v1008, %v1009
  %v1011 = vshll.u32 920167782, %v996
  %v1012 = vshrl.u32 1326507024, %v997
  %v1013 = vor.u32 %v1011, %v1012
  %vm1014 = vcmp.lt.s32.totalorder %v995, 1
  %vm1015 = vcmp.lt.s32.totalorder %v995, 2
  %vm1016 = vcmp.lt.s32.totalorder %v995, 3
  %vm1017 = vcmp.lt.s32.totalorder %v995, 4
  %v1018 = vsel %vm1014, %v998, %v1001
  %v1019 = vsel %vm1017, %v1007, 2102212464
  %v1020 = vsel %vm1016, %v1004, %v1019
  %v1021 = vsel %vm1015, %v1018, %v1020
  %v1022 = vsel %vm1014, %v1001, %v1004
  %v1023 = vsel %vm1017, %v1010, 920167782
  %v1024 = vsel %vm1016, %v1007, %v1023
  %v1025 = vsel %vm1015, %v1022, %v1024
  %v1026 = vsel %vm1014, %v1004, %v1007
  %v1027 = vsel %vm1017, %v1013, 1326507024
  %v1028 = vsel %vm1016, %v1010, %v1027
  %v1029 = vsel %vm1015, %v1026, %v1028
  %v1030 = vshll.u32 %v990, 8
  %v1031 = vmul.u32.u64.compose %v1030, %v1029
  %v1032 = vextract.low.u32 %v1031
  %v1033 = vextract.high.u32 %v1031
  %v1034 = vmul.u32.u64.compose %v1030, %v1025
  %v1035 = vextract.low.u32 %v1034
  %v1036 = vextract.high.u32 %v1034
  %v1037 = vmul.u32 %v1030, %v1021
  %v1038 = vadd.s32 %v1033, %v1035
  %vm1039 = vc.u32 %v1033, %v1035
  %v1040 = vadd.s32 %v1036, 1
  %v1041 = vsel %vm1039, %v1040, %v1036
  %v1042 = vadd.s32 %v1037, %v1041
  %v1043 = vadd.s32 %v1042, 536870912
  %v1044 = vshrl.u32 %v1043, 30
  %v1045 = vshll.u32 %v1044, 30
  %v1046 = vsub.s32 %v1042, %v1045
  %vm1047 = vcmp.lt.s32.totalorder %v1046, 0
  %v1048 = vsub.s32 0, %v1046
  %v1049 = vsel %vm1047, %v1048, %v1046
  %v1050 = vclz %v1049
  %v1051 = vsub.s32 %v1050, 2
  %vm1052 = vcmp.gt.s32.totalorder 0, %v1051
  %v1053 = vsel %vm1052, 0, %v1051
  %v1054 = vsub.s32 32, %v1053
  %v1055 = vshll.u32 %v1046, %v1053
  %v1056 = vshrl.u32 %v1038, %v1054
  %v1057 = vor.u32 %v1055, %v1056
  %v1058 = vsub.s32 4294967266, %v1053
  %v1059 = vadd.s32 %v1058, 127
  %v1060 = vshll.u32 %v1059, 23
  %v1061 = vor.u32 4788187, %v1060
  %v1062 = vand.u32 2147483647, %v1061
  %v1064 = vcvt.s32.f32 %v1057
  %v1065 = vmul.f32 %v1064, %v1062
  %v1066 = vxor.u32 %v1065, 2147483648
  %v1067 = vsel %vm984, %v1066, %v1065
  %v1068 = vsub.s32 4, %v1044
  %v1069 = vsel %vm984, %v1068, %v1044
  %v1070 = vsel %vm983, %v876, %v1067
  %v1071 = vsel %vm983, 0, %v1069
  %v1072 = vcosq.f32.pop %v1070
  %v1073 = vsinq.f32.pop %v1070
  %vm1074 = vweird.f32 %v876
  %v1075 = vand.u32 %v1071, 3
  %vm1076 = vcmp.lt.s32.totalorder %v1075, 2
  %vm1077 = vcmp.eq.s32.totalorder %v1075, 0
  %v1078 = vxor.u32 %v1073, 2147483648
  %v1079 = vsel %vm1077, %v1072, %v1078
  %vm1080 = vcmp.eq.s32.totalorder %v1075, 2
  %v1081 = vxor.u32 %v1072, 2147483648
  %v1082 = vsel %vm1080, %v1081, %v1073
  %v1083 = vsel %vm1076, %v1079, %v1082
  %v1084 = vsel %vm1074, nan, %v1083
  %v1085 = vand.u32 2147483647, %v877
  %vm1086 = vcmp.le.f32.partialorder %v1085, 0.7853982
  %vm1087 = vcmp.lt.s32.totalorder %v877, 0
  %v1088 = vand.u32 %v877, 2139095040
  %v1089 = vshrl.u32 %v1088, 23
  %v1090 = vsub.s32 %v1089, 127
  %v1091 = vand.u32 2147483647, %v877
  %v1092 = vand.u32 %v1091, 8388607
  %v1093 = vor.u32 %v1092, 8388608
  %v1094 = vsub.s32 0, %v1093
  %v1095 = vadd.s32 %v1090, 1
  %vm1096 = vcmp.gt.s32.totalorder %v1095, 0
  %v1097 = vsel %vm1096, %v1095, 0
  %v1098 = vshrl.u32 %v1097, 5
  %v1099 = vand.u32 %v1097, 31
  %v1100 = vsub.s32 32, %v1099
  %v1101 = vshrl.u32 683565275, %v1100
  %v1102 = vshll.u32 683565275, %v1099
  %v1103 = vshrl.u32 2475754826, %v1100
  %v1104 = vor.u32 %v1102, %v1103
  %v1105 = vshll.u32 2475754826, %v1099
  %v1106 = vshrl.u32 2131351028, %v1100
  %v1107 = vor.u32 %v1105, %v1106
  %v1108 = vshll.u32 2131351028, %v1099
  %v1109 = vshrl.u32 2102212464, %v1100
  %v1110 = vor.u32 %v1108, %v1109
  %v1111 = vshll.u32 2102212464, %v1099
  %v1112 = vshrl.u32 920167782, %v1100
  %v1113 = vor.u32 %v1111, %v1112
  %v1114 = vshll.u32 920167782, %v1099
  %v1115 = vshrl.u32 1326507024, %v1100
  %v1116 = vor.u32 %v1114, %v1115
  %vm1117 = vcmp.lt.s32.totalorder %v1098, 1
  %vm1118 = vcmp.lt.s32.totalorder %v1098, 2
  %vm1119 = vcmp.lt.s32.totalorder %v1098, 3
  %vm1120 = vcmp.lt.s32.totalorder %v1098, 4
  %v1121 = vsel %vm1117, %v1101, %v1104
  %v1122 = vsel %vm1120, %v1110, 2102212464
  %v1123 = vsel %vm1119, %v1107, %v1122
  %v1124 = vsel %vm1118, %v1121, %v1123
  %v1125 = vsel %vm1117, %v1104, %v1107
  %v1126 = vsel %vm1120, %v1113, 920167782
  %v1127 = vsel %vm1119, %v1110, %v1126
  %v1128 = vsel %vm1118, %v1125, %v1127
  %v1129 = vsel %vm1117, %v1107, %v1110
  %v1130 = vsel %vm1120, %v1116, 1326507024
  %v1131 = vsel %vm1119, %v1113, %v1130
  %v1132 = vsel %vm1118, %v1129, %v1131
  %v1133 = vshll.u32 %v1093, 8
  %v1134 = vmul.u32.u64.compose %v1133, %v1132
  %v1135 = vextract.low.u32 %v1134
  %v1136 = vextract.high.u32 %v1134
  %v1137 = vmul.u32.u64.compose %v1133, %v1128
  %v1138 = vextract.low.u32 %v1137
  %v1139 = vextract.high.u32 %v1137
  %v1140 = vmul.u32 %v1133, %v1124
  %v1141 = vadd.s32 %v1136, %v1138
  %vm1142 = vc.u32 %v1136, %v1138
  %v1143 = vadd.s32 %v1139, 1
  %v1144 = vsel %vm1142, %v1143, %v1139
  %v1145 = vadd.s32 %v1140, %v1144
  %v1146 = vadd.s32 %v1145, 536870912
  %v1147 = vshrl.u32 %v1146, 30
  %v1148 = vshll.u32 %v1147, 30
  %v1149 = vsub.s32 %v1145, %v1148
  %vm1150 = vcmp.lt.s32.totalorder %v1149, 0
  %v1151 = vsub.s32 0, %v1149
  %v1152 = vsel %vm1150, %v1151, %v1149
  %v1153 = vclz %v1152
  %v1154 = vsub.s32 %v1153, 2
  %vm1155 = vcmp.gt.s32.totalorder 0, %v1154
  %v1156 = vsel %vm1155, 0, %v1154
  %v1157 = vsub.s32 32, %v1156
  %v1158 = vshll.u32 %v1149, %v1156
  %v1159 = vshrl.u32 %v1141, %v1157
  %v1160 = vor.u32 %v1158, %v1159
  %v1161 = vsub.s32 4294967266, %v1156
  %v1162 = vadd.s32 %v1161, 127
  %v1163 = vshll.u32 %v1162, 23
  %v1164 = vor.u32 4788187, %v1163
  %v1165 = vand.u32 2147483647, %v1164
  %v1167 = vcvt.s32.f32 %v1160
  %v1168 = vmul.f32 %v1167, %v1165
  %v1169 = vxor.u32 %v1168, 2147483648
  %v1170 = vsel %vm1087, %v1169, %v1168
  %v1171 = vsub.s32 4, %v1147
  %v1172 = vsel %vm1087, %v1171, %v1147
  %v1173 = vsel %vm1086, %v877, %v1170
  %v1174 = vsel %vm1086, 0, %v1172
  %v1175 = vcosq.f32.pop %v1173
  %v1176 = vsinq.f32.pop %v1173
  %vm1177 = vweird.f32 %v877
  %v1178 = vand.u32 %v1174, 3
  %vm1179 = vcmp.lt.s32.totalorder %v1178, 2
  %vm1180 = vcmp.eq.s32.totalorder %v1178, 0
  %v1181 = vxor.u32 %v1176, 2147483648
  %v1182 = vsel %vm1180, %v1175, %v1181
  %vm1183 = vcmp.eq.s32.totalorder %v1178, 2
  %v1184 = vxor.u32 %v1175, 2147483648
  %v1185 = vsel %vm1183, %v1184, %v1176
  %v1186 = vsel %vm1179, %v1182, %v1185
  %v1187 = vsel %vm1177, nan, %v1186
  %v1188 = vand.u32 2147483647, %v878
  %vm1189 = vcmp.le.f32.partialorder %v1188, 0.7853982
  %vm1190 = vcmp.lt.s32.totalorder %v878, 0
  %v1191 = vand.u32 %v878, 2139095040
  %v1192 = vshrl.u32 %v1191, 23
  %v1193 = vsub.s32 %v1192, 127
  %v1194 = vand.u32 2147483647, %v878
  %v1195 = vand.u32 %v1194, 8388607
  %v1196 = vor.u32 %v1195, 8388608
  %v1197 = vsub.s32 0, %v1196
  %v1198 = vadd.s32 %v1193, 1
  %vm1199 = vcmp.gt.s32.totalorder %v1198, 0
  %v1200 = vsel %vm1199, %v1198, 0
  %v1201 = vshrl.u32 %v1200, 5
  %v1202 = vand.u32 %v1200, 31
  %v1203 = vsub.s32 32, %v1202
  %v1204 = vshrl.u32 683565275, %v1203
  %v1205 = vshll.u32 683565275, %v1202
  %v1206 = vshrl.u32 2475754826, %v1203
  %v1207 = vor.u32 %v1205, %v1206
  %v1208 = vshll.u32 2475754826, %v1202
  %v1209 = vshrl.u32 2131351028, %v1203
  %v1210 = vor.u32 %v1208, %v1209
  %v1211 = vshll.u32 2131351028, %v1202
  %v1212 = vshrl.u32 2102212464, %v1203
  %v1213 = vor.u32 %v1211, %v1212
  %v1214 = vshll.u32 2102212464, %v1202
  %v1215 = vshrl.u32 920167782, %v1203
  %v1216 = vor.u32 %v1214, %v1215
  %v1217 = vshll.u32 920167782, %v1202
  %v1218 = vshrl.u32 1326507024, %v1203
  %v1219 = vor.u32 %v1217, %v1218
  %vm1220 = vcmp.lt.s32.totalorder %v1201, 1
  %vm1221 = vcmp.lt.s32.totalorder %v1201, 2
  %vm1222 = vcmp.lt.s32.totalorder %v1201, 3
  %vm1223 = vcmp.lt.s32.totalorder %v1201, 4
  %v1224 = vsel %vm1220, %v1204, %v1207
  %v1225 = vsel %vm1223, %v1213, 2102212464
  %v1226 = vsel %vm1222, %v1210, %v1225
  %v1227 = vsel %vm1221, %v1224, %v1226
  %v1228 = vsel %vm1220, %v1207, %v1210
  %v1229 = vsel %vm1223, %v1216, 920167782
  %v1230 = vsel %vm1222, %v1213, %v1229
  %v1231 = vsel %vm1221, %v1228, %v1230
  %v1232 = vsel %vm1220, %v1210, %v1213
  %v1233 = vsel %vm1223, %v1219, 1326507024
  %v1234 = vsel %vm1222, %v1216, %v1233
  %v1235 = vsel %vm1221, %v1232, %v1234
  %v1236 = vshll.u32 %v1196, 8
  %v1237 = vmul.u32.u64.compose %v1236, %v1235
  %v1238 = vextract.low.u32 %v1237
  %v1239 = vextract.high.u32 %v1237
  %v1240 = vmul.u32.u64.compose %v1236, %v1231
  %v1241 = vextract.low.u32 %v1240
  %v1242 = vextract.high.u32 %v1240
  %v1243 = vmul.u32 %v1236, %v1227
  %v1244 = vadd.s32 %v1239, %v1241
  %vm1245 = vc.u32 %v1239, %v1241
  %v1246 = vadd.s32 %v1242, 1
  %v1247 = vsel %vm1245, %v1246, %v1242
  %v1248 = vadd.s32 %v1243, %v1247
  %v1249 = vadd.s32 %v1248, 536870912
  %v1250 = vshrl.u32 %v1249, 30
  %v1251 = vshll.u32 %v1250, 30
  %v1252 = vsub.s32 %v1248, %v1251
  %vm1253 = vcmp.lt.s32.totalorder %v1252, 0
  %v1254 = vsub.s32 0, %v1252
  %v1255 = vsel %vm1253, %v1254, %v1252
  %v1256 = vclz %v1255
  %v1257 = vsub.s32 %v1256, 2
  %vm1258 = vcmp.gt.s32.totalorder 0, %v1257
  %v1259 = vsel %vm1258, 0, %v1257
  %v1260 = vsub.s32 32, %v1259
  %v1261 = vshll.u32 %v1252, %v1259
  %v1262 = vshrl.u32 %v1244, %v1260
  %v1263 = vor.u32 %v1261, %v1262
  %v1264 = vsub.s32 4294967266, %v1259
  %v1265 = vadd.s32 %v1264, 127
  %v1266 = vshll.u32 %v1265, 23
  %v1267 = vor.u32 4788187, %v1266
  %v1268 = vand.u32 2147483647, %v1267
  %v1270 = vcvt.s32.f32 %v1263
  %v1271 = vmul.f32 %v1270, %v1268
  %v1272 = vxor.u32 %v1271, 2147483648
  %v1273 = vsel %vm1190, %v1272, %v1271
  %v1274 = vsub.s32 4, %v1250
  %v1275 = vsel %vm1190, %v1274, %v1250
  %v1276 = vsel %vm1189, %v878, %v1273
  %v1277 = vsel %vm1189, 0, %v1275
  %v1278 = vcosq.f32.pop %v1276
  %v1279 = vsinq.f32.pop %v1276
  %vm1280 = vweird.f32 %v878
  %v1281 = vand.u32 %v1277, 3
  %vm1282 = vcmp.lt.s32.totalorder %v1281, 2
  %vm1283 = vcmp.eq.s32.totalorder %v1281, 0
  %v1284 = vxor.u32 %v1279, 2147483648
  %v1285 = vsel %vm1283, %v1278, %v1284
  %vm1286 = vcmp.eq.s32.totalorder %v1281, 2
  %v1287 = vxor.u32 %v1278, 2147483648
  %v1288 = vsel %vm1286, %v1287, %v1279
  %v1289 = vsel %vm1282, %v1285, %v1288
  %v1290 = vsel %vm1280, nan, %v1289
  %v1291 = vld [vmem:[%s5] sm:$0xff]
  %v1292 = vld [vmem:[%s6] sm:$0x1]
  %v1294 = vlaneseq
  %v1295 = vshrl.u32 %v1294, 7
  %v1296 = vsub.s32 0, %v1295
  %v1297 = vrot.slane %v1292, %v1296
  %1299 = vxpose.xlu0.b32.start [1/16] %v981, 128
  %1300 = vxpose.xlu0.b32.cont [2/16] 0.0, 128
  %1301 = vxpose.xlu0.b32.cont [3/16] 0.0, 128
  %1302 = vxpose.xlu0.b32.cont [4/16] 0.0, 128
  %1303 = vxpose.xlu0.b32.cont [5/16] 0.0, 128
  %1304 = vxpose.xlu0.b32.cont [6/16] 0.0, 128
  %1305 = vxpose.xlu0.b32.cont [7/16] 0.0, 128
  %1306 = vxpose.xlu0.b32.cont [8/16] 0.0, 128
  %1307 = vxpose.xlu0.b32.cont [9/16] 0.0, 128
  %1308 = vxpose.xlu0.b32.cont [10/16] 0.0, 128
  %1309 = vxpose.xlu0.b32.cont [11/16] 0.0, 128
  %1310 = vxpose.xlu0.b32.cont [12/16] 0.0, 128
  %1311 = vxpose.xlu0.b32.cont [13/16] 0.0, 128
  %1312 = vxpose.xlu0.b32.cont [14/16] 0.0, 128
  %1313 = vxpose.xlu0.b32.cont [15/16] 0.0, 128
  %1314 = vxpose.xlu0.b32.end [16/16] 0.0, 128
  %v1315 = vpop.trf.xlu0
  %v1316 = vpop.trf.xlu0
  %v1317 = vpop.trf.xlu0
  %v1318 = vpop.trf.xlu0
  %v1319 = vpop.trf.xlu0
  %v1320 = vpop.trf.xlu0
  %v1321 = vpop.trf.xlu0
  %v1322 = vpop.trf.xlu0
  %v1323 = vpop.trf.xlu0
  %v1324 = vpop.trf.xlu0
  %v1325 = vpop.trf.xlu0
  %v1326 = vpop.trf.xlu0
  %v1327 = vpop.trf.xlu0
  %v1328 = vpop.trf.xlu0
  %v1329 = vpop.trf.xlu0
  %v1330 = vpop.trf.xlu0
  %1331 = vxpose.xlu0.b32.start [1/16] %v1084, 128
  %1332 = vxpose.xlu0.b32.cont [2/16] 0.0, 128
  %1333 = vxpose.xlu0.b32.cont [3/16] 0.0, 128
  %1334 = vxpose.xlu0.b32.cont [4/16] 0.0, 128
  %1335 = vxpose.xlu0.b32.cont [5/16] 0.0, 128
  %1336 = vxpose.xlu0.b32.cont [6/16] 0.0, 128
  %1337 = vxpose.xlu0.b32.cont [7/16] 0.0, 128
  %1338 = vxpose.xlu0.b32.cont [8/16] 0.0, 128
  %1339 = vxpose.xlu0.b32.cont [9/16] 0.0, 128
  %1340 = vxpose.xlu0.b32.cont [10/16] 0.0, 128
  %1341 = vxpose.xlu0.b32.cont [11/16] 0.0, 128
  %1342 = vxpose.xlu0.b32.cont [12/16] 0.0, 128
  %1343 = vxpose.xlu0.b32.cont [13/16] 0.0, 128
  %1344 = vxpose.xlu0.b32.cont [14/16] 0.0, 128
  %1345 = vxpose.xlu0.b32.cont [15/16] 0.0, 128
  %1346 = vxpose.xlu0.b32.end [16/16] 0.0, 128
  %v1347 = vpop.trf.xlu0
  %v1348 = vpop.trf.xlu0
  %v1349 = vpop.trf.xlu0
  %v1350 = vpop.trf.xlu0
  %v1351 = vpop.trf.xlu0
  %v1352 = vpop.trf.xlu0
  %v1353 = vpop.trf.xlu0
  %v1354 = vpop.trf.xlu0
  %v1355 = vpop.trf.xlu0
  %v1356 = vpop.trf.xlu0
  %v1357 = vpop.trf.xlu0
  %v1358 = vpop.trf.xlu0
  %v1359 = vpop.trf.xlu0
  %v1360 = vpop.trf.xlu0
  %v1361 = vpop.trf.xlu0
  %v1362 = vpop.trf.xlu0
  %1363 = vxpose.xlu0.b32.start [1/16] %v1187, 128
  %1364 = vxpose.xlu0.b32.cont [2/16] 0.0, 128
  %1365 = vxpose.xlu0.b32.cont [3/16] 0.0, 128
  %1366 = vxpose.xlu0.b32.cont [4/16] 0.0, 128
  %1367 = vxpose.xlu0.b32.cont [5/16] 0.0, 128
  %1368 = vxpose.xlu0.b32.cont [6/16] 0.0, 128
  %1369 = vxpose.xlu0.b32.cont [7/16] 0.0, 128
  %1370 = vxpose.xlu0.b32.cont [8/16] 0.0, 128
  %1371 = vxpose.xlu0.b32.cont [9/16] 0.0, 128
  %1372 = vxpose.xlu0.b32.cont [10/16] 0.0, 128
  %1373 = vxpose.xlu0.b32.cont [11/16] 0.0, 128
  %1374 = vxpose.xlu0.b32.cont [12/16] 0.0, 128
  %1375 = vxpose.xlu0.b32.cont [13/16] 0.0, 128
  %1376 = vxpose.xlu0.b32.cont [14/16] 0.0, 128
  %1377 = vxpose.xlu0.b32.cont [15/16] 0.0, 128
  %1378 = vxpose.xlu0.b32.end [16/16] 0.0, 128
  %v1379 = vpop.trf.xlu0
  %v1380 = vpop.trf.xlu0
  %v1381 = vpop.trf.xlu0
  %v1382 = vpop.trf.xlu0
  %v1383 = vpop.trf.xlu0
  %v1384 = vpop.trf.xlu0
  %v1385 = vpop.trf.xlu0
  %v1386 = vpop.trf.xlu0
  %v1387 = vpop.trf.xlu0
  %v1388 = vpop.trf.xlu0
  %v1389 = vpop.trf.xlu0
  %v1390 = vpop.trf.xlu0
  %v1391 = vpop.trf.xlu0
  %v1392 = vpop.trf.xlu0
  %v1393 = vpop.trf.xlu0
  %v1394 = vpop.trf.xlu0
  %1395 = vxpose.xlu0.b32.start [1/16] %v1290, 128
  %1396 = vxpose.xlu0.b32.cont [2/16] 0.0, 128
  %1397 = vxpose.xlu0.b32.cont [3/16] 0.0, 128
  %1398 = vxpose.xlu0.b32.cont [4/16] 0.0, 128
  %1399 = vxpose.xlu0.b32.cont [5/16] 0.0, 128
  %1400 = vxpose.xlu0.b32.cont [6/16] 0.0, 128
  %1401 = vxpose.xlu0.b32.cont [7/16] 0.0, 128
  %1402 = vxpose.xlu0.b32.cont [8/16] 0.0, 128
  %1403 = vxpose.xlu0.b32.cont [9/16] 0.0, 128
  %1404 = vxpose.xlu0.b32.cont [10/16] 0.0, 128
  %1405 = vxpose.xlu0.b32.cont [11/16] 0.0, 128
  %1406 = vxpose.xlu0.b32.cont [12/16] 0.0, 128
  %1407 = vxpose.xlu0.b32.cont [13/16] 0.0, 128
  %1408 = vxpose.xlu0.b32.cont [14/16] 0.0, 128
  %1409 = vxpose.xlu0.b32.cont [15/16] 0.0, 128
  %1410 = vxpose.xlu0.b32.end [16/16] 0.0, 128
  %v1411 = vpop.trf.xlu0
  %v1412 = vpop.trf.xlu0
  %v1413 = vpop.trf.xlu0
  %v1414 = vpop.trf.xlu0
  %v1415 = vpop.trf.xlu0
  %v1416 = vpop.trf.xlu0
  %v1417 = vpop.trf.xlu0
  %v1418 = vpop.trf.xlu0
  %v1419 = vpop.trf.xlu0
  %v1420 = vpop.trf.xlu0
  %v1421 = vpop.trf.xlu0
  %v1422 = vpop.trf.xlu0
  %v1423 = vpop.trf.xlu0
  %v1424 = vpop.trf.xlu0
  %v1425 = vpop.trf.xlu0
  %v1426 = vpop.trf.xlu0
  %vm1427 = vcmask 64512
  %v1429 = vsel %vm1427, %v1315, 0
  %v1432 = vsel %vm1427, %v1316, 0
  %v1435 = vsel %vm1427, %v1317, 0
  %v1438 = vsel %vm1427, %v1318, 0
  %v1441 = vsel %vm1427, %v1319, 0
  %v1444 = vsel %vm1427, %v1320, 0
  %v1447 = vsel %vm1427, %v1321, 0
  %v1450 = vsel %vm1427, %v1322, 0
  %v1453 = vsel %vm1427, %v1323, 0
  %v1456 = vsel %vm1427, %v1324, 0
  %v1459 = vsel %vm1427, %v1325, 0
  %v1462 = vsel %vm1427, %v1326, 0
  %v1465 = vsel %vm1427, %v1327, 0
  %v1468 = vsel %vm1427, %v1328, 0
  %v1471 = vsel %vm1427, %v1329, 0
  %v1474 = vsel %vm1427, %v1330, 0
  %v1477 = vsel %vm1427, %v1347, 0
  %v1480 = vsel %vm1427, %v1348, 0
  %v1483 = vsel %vm1427, %v1349, 0
  %v1486 = vsel %vm1427, %v1350, 0
  %v1489 = vsel %vm1427, %v1351, 0
  %v1492 = vsel %vm1427, %v1352, 0
  %v1495 = vsel %vm1427, %v1353, 0
  %v1498 = vsel %vm1427, %v1354, 0
  %v1501 = vsel %vm1427, %v1355, 0
  %v1504 = vsel %vm1427, %v1356, 0
  %v1507 = vsel %vm1427, %v1357, 0
  %v1510 = vsel %vm1427, %v1358, 0
  %v1513 = vsel %vm1427, %v1359, 0
  %v1516 = vsel %vm1427, %v1360, 0
  %v1519 = vsel %vm1427, %v1361, 0
  %v1522 = vsel %vm1427, %v1362, 0
  %v1525 = vsel %vm1427, %v1379, 0
  %v1528 = vsel %vm1427, %v1380, 0
  %v1531 = vsel %vm1427, %v1381, 0
  %v1534 = vsel %vm1427, %v1382, 0
  %v1537 = vsel %vm1427, %v1383, 0
  %v1540 = vsel %vm1427, %v1384, 0
  %v1543 = vsel %vm1427, %v1385, 0
  %v1546 = vsel %vm1427, %v1386, 0
  %v1549 = vsel %vm1427, %v1387, 0
  %v1552 = vsel %vm1427, %v1388, 0
  %v1555 = vsel %vm1427, %v1389, 0
  %v1558 = vsel %vm1427, %v1390, 0
  %v1561 = vsel %vm1427, %v1391, 0
  %v1564 = vsel %vm1427, %v1392, 0
  %v1567 = vsel %vm1427, %v1393, 0
  %v1570 = vsel %vm1427, %v1394, 0
  %v1573 = vsel %vm1427, %v1411, 0
  %v1576 = vsel %vm1427, %v1412, 0
  %v1579 = vsel %vm1427, %v1413, 0
  %v1582 = vsel %vm1427, %v1414, 0
  %v1585 = vsel %vm1427, %v1415, 0
  %v1588 = vsel %vm1427, %v1416, 0
  %v1591 = vsel %vm1427, %v1417, 0
  %v1594 = vsel %vm1427, %v1418, 0
  %v1597 = vsel %vm1427, %v1419, 0
  %v1600 = vsel %vm1427, %v1420, 0
  %v1603 = vsel %vm1427, %v1421, 0
  %v1606 = vsel %vm1427, %v1422, 0
  %v1609 = vsel %vm1427, %v1423, 0
  %v1612 = vsel %vm1427, %v1424, 0
  %v1615 = vsel %vm1427, %v1425, 0
  %v1618 = vsel %vm1427, %v1426, 0
  %1620 = vmatprep.subr.mxu0 0.0
  %1621 = vmatpush1.msra.mxu0 0.0
  %1622 = vmatprep.subr.mxu0 0.0
  %1623 = vmatpush1.msra.mxu0 0.0
  %1624 = vmatprep.subr.mxu0 0.0
  %1625 = vmatpush1.msra.mxu0 0.0
  %1626 = vmatprep.subr.mxu0 0.0
  %1627 = vmatpush1.msra.mxu0 0.0
  %1628 = vmatprep.subr.mxu0 0.0
  %1629 = vmatpush1.msra.mxu0 0.0
  %1630 = vmatprep.subr.mxu0 0.0
  %1631 = vmatpush1.msra.mxu0 0.0
  %1632 = vmatprep.subr.mxu0 0.0
  %1633 = vmatpush1.msra.mxu0 0.0
  %1634 = vmatprep.subr.mxu0 0.0
  %1635 = vmatpush1.msra.mxu0 0.0
  %1636 = vmatprep.subr.mxu0 0.0
  %1637 = vmatpush1.msra.mxu0 0.0
  %1638 = vmatprep.subr.mxu0 0.0
  %1639 = vmatpush1.msra.mxu0 0.0
  %1640 = vmatprep.subr.mxu0 0.0
  %1641 = vmatpush1.msra.mxu0 0.0
  %1642 = vmatprep.subr.mxu0 0.0
  %1643 = vmatpush1.msra.mxu0 0.0
  %1644 = vmatprep.subr.mxu0 0.0
  %1645 = vmatpush1.msra.mxu0 0.0
  %1646 = vmatprep.subr.mxu0 0.0
  %1647 = vmatpush1.msra.mxu0 0.0
  %1648 = vmatprep.subr.mxu0 0.0
  %1649 = vmatpush1.msra.mxu0 0.0
  %1650 = vmatprep.subr.mxu0 0.0
  %1651 = vmatpush1.msra.mxu0 %v1291
  %1652 = vmatprep.subr.mxu0 0.0
  %1653 = vmatpush2.msra.mxu0 0.0
  %1654 = vmatprep.subr.mxu0 0.0
  %1655 = vmatpush2.msra.mxu0 0.0
  %1656 = vmatprep.subr.mxu0 0.0
  %1657 = vmatpush2.msra.mxu0 0.0
  %1658 = vmatprep.subr.mxu0 0.0
  %1659 = vmatpush2.msra.mxu0 0.0
  %1660 = vmatprep.subr.mxu0 0.0
  %1661 = vmatpush2.msra.mxu0 0.0
  %1662 = vmatprep.subr.mxu0 0.0
  %1663 = vmatpush2.msra.mxu0 0.0
  %1664 = vmatprep.subr.mxu0 0.0
  %1665 = vmatpush2.msra.mxu0 0.0
  %1666 = vmatprep.subr.mxu0 0.0
  %1667 = vmatpush2.msra.mxu0 0.0
  %1668 = vmatprep.subr.mxu0 0.0
  %1669 = vmatpush2.msra.mxu0 0.0
  %1670 = vmatprep.subr.mxu0 0.0
  %1671 = vmatpush2.msra.mxu0 0.0
  %1672 = vmatprep.subr.mxu0 0.0
  %1673 = vmatpush2.msra.mxu0 0.0
  %1674 = vmatprep.subr.mxu0 0.0
  %1675 = vmatpush2.msra.mxu0 0.0
  %1676 = vmatprep.subr.mxu0 0.0
  %1677 = vmatpush2.msra.mxu0 0.0
  %1678 = vmatprep.subr.mxu0 0.0
  %1679 = vmatpush2.msra.mxu0 0.0
  %1680 = vmatprep.subr.mxu0 0.0
  %1681 = vmatpush2.msra.mxu0 0.0
  %1682 = vmatprep.subr.mxu0 0.0
  %1683 = vmatpush2.msra.mxu0 0.0
  %1684 = vmatprep.mubr.f32.mxu0 0.0
  %1685 = vmatmul.mubr.f32.gmra.mxu0 %v1429
  %v1686 = vpop.f32.mrf.mxu0
  %v1687 = vadd.f32 %v1297, %v1686
  %v1688 = vpop.f32.mrf.mxu0
  %1689 = vmatprep.mubr.f32.mxu0 0.0
  %1690 = vmatmul.mubr.f32.gmra.mxu0 %v1432
  %v1691 = vpop.f32.mrf.mxu0
  %v1692 = vadd.f32 %v1297, %v1691
  %v1693 = vpop.f32.mrf.mxu0
  %1694 = vmatprep.mubr.f32.mxu0 0.0
  %1695 = vmatmul.mubr.f32.gmra.mxu0 %v1435
  %v1696 = vpop.f32.mrf.mxu0
  %v1697 = vadd.f32 %v1297, %v1696
  %v1698 = vpop.f32.mrf.mxu0
  %1699 = vmatprep.mubr.f32.mxu0 0.0
  %1700 = vmatmul.mubr.f32.gmra.mxu0 %v1438
  %v1701 = vpop.f32.mrf.mxu0
  %v1702 = vadd.f32 %v1297, %v1701
  %v1703 = vpop.f32.mrf.mxu0
  %1704 = vmatprep.mubr.f32.mxu0 0.0
  %1705 = vmatmul.mubr.f32.gmra.mxu0 %v1441
  %v1706 = vpop.f32.mrf.mxu0
  %v1707 = vadd.f32 %v1297, %v1706
  %v1708 = vpop.f32.mrf.mxu0
  %1709 = vmatprep.mubr.f32.mxu0 0.0
  %1710 = vmatmul.mubr.f32.gmra.mxu0 %v1444
  %v1711 = vpop.f32.mrf.mxu0
  %v1712 = vadd.f32 %v1297, %v1711
  %v1713 = vpop.f32.mrf.mxu0
  %1714 = vmatprep.mubr.f32.mxu0 0.0
  %1715 = vmatmul.mubr.f32.gmra.mxu0 %v1447
  %v1716 = vpop.f32.mrf.mxu0
  %v1717 = vadd.f32 %v1297, %v1716
  %v1718 = vpop.f32.mrf.mxu0
  %1719 = vmatprep.mubr.f32.mxu0 0.0
  %1720 = vmatmul.mubr.f32.gmra.mxu0 %v1450
  %v1721 = vpop.f32.mrf.mxu0
  %v1722 = vadd.f32 %v1297, %v1721
  %v1723 = vpop.f32.mrf.mxu0
  %1724 = vmatprep.mubr.f32.mxu0 0.0
  %1725 = vmatmul.mubr.f32.gmra.mxu0 %v1453
  %v1726 = vpop.f32.mrf.mxu0
  %v1727 = vadd.f32 %v1297, %v1726
  %v1728 = vpop.f32.mrf.mxu0
  %1729 = vmatprep.mubr.f32.mxu0 0.0
  %1730 = vmatmul.mubr.f32.gmra.mxu0 %v1456
  %v1731 = vpop.f32.mrf.mxu0
  %v1732 = vadd.f32 %v1297, %v1731
  %v1733 = vpop.f32.mrf.mxu0
  %1734 = vmatprep.mubr.f32.mxu0 0.0
  %1735 = vmatmul.mubr.f32.gmra.mxu0 %v1459
  %v1736 = vpop.f32.mrf.mxu0
  %v1737 = vadd.f32 %v1297, %v1736
  %v1738 = vpop.f32.mrf.mxu0
  %1739 = vmatprep.mubr.f32.mxu0 0.0
  %1740 = vmatmul.mubr.f32.gmra.mxu0 %v1462
  %v1741 = vpop.f32.mrf.mxu0
  %v1742 = vadd.f32 %v1297, %v1741
  %v1743 = vpop.f32.mrf.mxu0
  %1744 = vmatprep.mubr.f32.mxu0 0.0
  %1745 = vmatmul.mubr.f32.gmra.mxu0 %v1465
  %v1746 = vpop.f32.mrf.mxu0
  %v1747 = vadd.f32 %v1297, %v1746
  %v1748 = vpop.f32.mrf.mxu0
  %1749 = vmatprep.mubr.f32.mxu0 0.0
  %1750 = vmatmul.mubr.f32.gmra.mxu0 %v1468
  %v1751 = vpop.f32.mrf.mxu0
  %v1752 = vadd.f32 %v1297, %v1751
  %v1753 = vpop.f32.mrf.mxu0
  %1754 = vmatprep.mubr.f32.mxu0 0.0
  %1755 = vmatmul.mubr.f32.gmra.mxu0 %v1471
  %v1756 = vpop.f32.mrf.mxu0
  %v1757 = vadd.f32 %v1297, %v1756
  %v1758 = vpop.f32.mrf.mxu0
  %1759 = vmatprep.mubr.f32.mxu0 0.0
  %1760 = vmatmul.mubr.f32.gmra.mxu0 %v1474
  %v1761 = vpop.f32.mrf.mxu0
  %v1762 = vadd.f32 %v1297, %v1761
  %v1763 = vpop.f32.mrf.mxu0
  %1764 = vmatprep.mubr.f32.mxu0 0.0
  %1765 = vmatmul.mubr.f32.gmra.mxu0 %v1477
  %v1766 = vpop.f32.mrf.mxu0
  %v1767 = vadd.f32 %v1297, %v1766
  %v1768 = vpop.f32.mrf.mxu0
  %1769 = vmatprep.mubr.f32.mxu0 0.0
  %1770 = vmatmul.mubr.f32.gmra.mxu0 %v1480
  %v1771 = vpop.f32.mrf.mxu0
  %v1772 = vadd.f32 %v1297, %v1771
  %v1773 = vpop.f32.mrf.mxu0
  %1774 = vmatprep.mubr.f32.mxu0 0.0
  %1775 = vmatmul.mubr.f32.gmra.mxu0 %v1483
  %v1776 = vpop.f32.mrf.mxu0
  %v1777 = vadd.f32 %v1297, %v1776
  %v1778 = vpop.f32.mrf.mxu0
  %1779 = vmatprep.mubr.f32.mxu0 0.0
  %1780 = vmatmul.mubr.f32.gmra.mxu0 %v1486
  %v1781 = vpop.f32.mrf.mxu0
  %v1782 = vadd.f32 %v1297, %v1781
  %v1783 = vpop.f32.mrf.mxu0
  %1784 = vmatprep.mubr.f32.mxu0 0.0
  %1785 = vmatmul.mubr.f32.gmra.mxu0 %v1489
  %v1786 = vpop.f32.mrf.mxu0
  %v1787 = vadd.f32 %v1297, %v1786
  %v1788 = vpop.f32.mrf.mxu0
  %1789 = vmatprep.mubr.f32.mxu0 0.0
  %1790 = vmatmul.mubr.f32.gmra.mxu0 %v1492
  %v1791 = vpop.f32.mrf.mxu0
  %v1792 = vadd.f32 %v1297, %v1791
  %v1793 = vpop.f32.mrf.mxu0
  %1794 = vmatprep.mubr.f32.mxu0 0.0
  %1795 = vmatmul.mubr.f32.gmra.mxu0 %v1495
  %v1796 = vpop.f32.mrf.mxu0
  %v1797 = vadd.f32 %v1297, %v1796
  %v1798 = vpop.f32.mrf.mxu0
  %1799 = vmatprep.mubr.f32.mxu0 0.0
  %1800 = vmatmul.mubr.f32.gmra.mxu0 %v1498
  %v1801 = vpop.f32.mrf.mxu0
  %v1802 = vadd.f32 %v1297, %v1801
  %v1803 = vpop.f32.mrf.mxu0
  %1804 = vmatprep.mubr.f32.mxu0 0.0
  %1805 = vmatmul.mubr.f32.gmra.mxu0 %v1501
  %v1806 = vpop.f32.mrf.mxu0
  %v1807 = vadd.f32 %v1297, %v1806
  %v1808 = vpop.f32.mrf.mxu0
  %1809 = vmatprep.mubr.f32.mxu0 0.0
  %1810 = vmatmul.mubr.f32.gmra.mxu0 %v1504
  %v1811 = vpop.f32.mrf.mxu0
  %v1812 = vadd.f32 %v1297, %v1811
  %v1813 = vpop.f32.mrf.mxu0
  %1814 = vmatprep.mubr.f32.mxu0 0.0
  %1815 = vmatmul.mubr.f32.gmra.mxu0 %v1507
  %v1816 = vpop.f32.mrf.mxu0
  %v1817 = vadd.f32 %v1297, %v1816
  %v1818 = vpop.f32.mrf.mxu0
  %1819 = vmatprep.mubr.f32.mxu0 0.0
  %1820 = vmatmul.mubr.f32.gmra.mxu0 %v1510
  %v1821 = vpop.f32.mrf.mxu0
  %v1822 = vadd.f32 %v1297, %v1821
  %v1823 = vpop.f32.mrf.mxu0
  %1824 = vmatprep.mubr.f32.mxu0 0.0
  %1825 = vmatmul.mubr.f32.gmra.mxu0 %v1513
  %v1826 = vpop.f32.mrf.mxu0
  %v1827 = vadd.f32 %v1297, %v1826
  %v1828 = vpop.f32.mrf.mxu0
  %1829 = vmatprep.mubr.f32.mxu0 0.0
  %1830 = vmatmul.mubr.f32.gmra.mxu0 %v1516
  %v1831 = vpop.f32.mrf.mxu0
  %v1832 = vadd.f32 %v1297, %v1831
  %v1833 = vpop.f32.mrf.mxu0
  %1834 = vmatprep.mubr.f32.mxu0 0.0
  %1835 = vmatmul.mubr.f32.gmra.mxu0 %v1519
  %v1836 = vpop.f32.mrf.mxu0
  %v1837 = vadd.f32 %v1297, %v1836
  %v1838 = vpop.f32.mrf.mxu0
  %1839 = vmatprep.mubr.f32.mxu0 0.0
  %1840 = vmatmul.mubr.f32.gmra.mxu0 %v1522
  %v1841 = vpop.f32.mrf.mxu0
  %v1842 = vadd.f32 %v1297, %v1841
  %v1843 = vpop.f32.mrf.mxu0
  %1844 = vmatprep.mubr.f32.mxu0 0.0
  %1845 = vmatmul.mubr.f32.gmra.mxu0 %v1525
  %v1846 = vpop.f32.mrf.mxu0
  %v1847 = vadd.f32 %v1297, %v1846
  %v1848 = vpop.f32.mrf.mxu0
  %1849 = vmatprep.mubr.f32.mxu0 0.0
  %1850 = vmatmul.mubr.f32.gmra.mxu0 %v1528
  %v1851 = vpop.f32.mrf.mxu0
  %v1852 = vadd.f32 %v1297, %v1851
  %v1853 = vpop.f32.mrf.mxu0
  %1854 = vmatprep.mubr.f32.mxu0 0.0
  %1855 = vmatmul.mubr.f32.gmra.mxu0 %v1531
  %v1856 = vpop.f32.mrf.mxu0
  %v1857 = vadd.f32 %v1297, %v1856
  %v1858 = vpop.f32.mrf.mxu0
  %1859 = vmatprep.mubr.f32.mxu0 0.0
  %1860 = vmatmul.mubr.f32.gmra.mxu0 %v1534
  %v1861 = vpop.f32.mrf.mxu0
  %v1862 = vadd.f32 %v1297, %v1861
  %v1863 = vpop.f32.mrf.mxu0
  %1864 = vmatprep.mubr.f32.mxu0 0.0
  %1865 = vmatmul.mubr.f32.gmra.mxu0 %v1537
  %v1866 = vpop.f32.mrf.mxu0
  %v1867 = vadd.f32 %v1297, %v1866
  %v1868 = vpop.f32.mrf.mxu0
  %1869 = vmatprep.mubr.f32.mxu0 0.0
  %1870 = vmatmul.mubr.f32.gmra.mxu0 %v1540
  %v1871 = vpop.f32.mrf.mxu0
  %v1872 = vadd.f32 %v1297, %v1871
  %v1873 = vpop.f32.mrf.mxu0
  %1874 = vmatprep.mubr.f32.mxu0 0.0
  %1875 = vmatmul.mubr.f32.gmra.mxu0 %v1543
  %v1876 = vpop.f32.mrf.mxu0
  %v1877 = vadd.f32 %v1297, %v1876
  %v1878 = vpop.f32.mrf.mxu0
  %1879 = vmatprep.mubr.f32.mxu0 0.0
  %1880 = vmatmul.mubr.f32.gmra.mxu0 %v1546
  %v1881 = vpop.f32.mrf.mxu0
  %v1882 = vadd.f32 %v1297, %v1881
  %v1883 = vpop.f32.mrf.mxu0
  %1884 = vmatprep.mubr.f32.mxu0 0.0
  %1885 = vmatmul.mubr.f32.gmra.mxu0 %v1549
  %v1886 = vpop.f32.mrf.mxu0
  %v1887 = vadd.f32 %v1297, %v1886
  %v1888 = vpop.f32.mrf.mxu0
  %1889 = vmatprep.mubr.f32.mxu0 0.0
  %1890 = vmatmul.mubr.f32.gmra.mxu0 %v1552
  %v1891 = vpop.f32.mrf.mxu0
  %v1892 = vadd.f32 %v1297, %v1891
  %v1893 = vpop.f32.mrf.mxu0
  %1894 = vmatprep.mubr.f32.mxu0 0.0
  %1895 = vmatmul.mubr.f32.gmra.mxu0 %v1555
  %v1896 = vpop.f32.mrf.mxu0
  %v1897 = vadd.f32 %v1297, %v1896
  %v1898 = vpop.f32.mrf.mxu0
  %1899 = vmatprep.mubr.f32.mxu0 0.0
  %1900 = vmatmul.mubr.f32.gmra.mxu0 %v1558
  %v1901 = vpop.f32.mrf.mxu0
  %v1902 = vadd.f32 %v1297, %v1901
  %v1903 = vpop.f32.mrf.mxu0
  %1904 = vmatprep.mubr.f32.mxu0 0.0
  %1905 = vmatmul.mubr.f32.gmra.mxu0 %v1561
  %v1906 = vpop.f32.mrf.mxu0
  %v1907 = vadd.f32 %v1297, %v1906
  %v1908 = vpop.f32.mrf.mxu0
  %1909 = vmatprep.mubr.f32.mxu0 0.0
  %1910 = vmatmul.mubr.f32.gmra.mxu0 %v1564
  %v1911 = vpop.f32.mrf.mxu0
  %v1912 = vadd.f32 %v1297, %v1911
  %v1913 = vpop.f32.mrf.mxu0
  %1914 = vmatprep.mubr.f32.mxu0 0.0
  %1915 = vmatmul.mubr.f32.gmra.mxu0 %v1567
  %v1916 = vpop.f32.mrf.mxu0
  %v1917 = vadd.f32 %v1297, %v1916
  %v1918 = vpop.f32.mrf.mxu0
  %1919 = vmatprep.mubr.f32.mxu0 0.0
  %1920 = vmatmul.mubr.f32.gmra.mxu0 %v1570
  %v1921 = vpop.f32.mrf.mxu0
  %v1922 = vadd.f32 %v1297, %v1921
  %v1923 = vpop.f32.mrf.mxu0
  %1924 = vmatprep.mubr.f32.mxu0 0.0
  %1925 = vmatmul.mubr.f32.gmra.mxu0 %v1573
  %v1926 = vpop.f32.mrf.mxu0
  %v1927 = vadd.f32 %v1297, %v1926
  %v1928 = vpop.f32.mrf.mxu0
  %1929 = vmatprep.mubr.f32.mxu0 0.0
  %1930 = vmatmul.mubr.f32.gmra.mxu0 %v1576
  %v1931 = vpop.f32.mrf.mxu0
  %v1932 = vadd.f32 %v1297, %v1931
  %v1933 = vpop.f32.mrf.mxu0
  %1934 = vmatprep.mubr.f32.mxu0 0.0
  %1935 = vmatmul.mubr.f32.gmra.mxu0 %v1579
  %v1936 = vpop.f32.mrf.mxu0
  %v1937 = vadd.f32 %v1297, %v1936
  %v1938 = vpop.f32.mrf.mxu0
  %1939 = vmatprep.mubr.f32.mxu0 0.0
  %1940 = vmatmul.mubr.f32.gmra.mxu0 %v1582
  %v1941 = vpop.f32.mrf.mxu0
  %v1942 = vadd.f32 %v1297, %v1941
  %v1943 = vpop.f32.mrf.mxu0
  %1944 = vmatprep.mubr.f32.mxu0 0.0
  %1945 = vmatmul.mubr.f32.gmra.mxu0 %v1585
  %v1946 = vpop.f32.mrf.mxu0
  %v1947 = vadd.f32 %v1297, %v1946
  %v1948 = vpop.f32.mrf.mxu0
  %1949 = vmatprep.mubr.f32.mxu0 0.0
  %1950 = vmatmul.mubr.f32.gmra.mxu0 %v1588
  %v1951 = vpop.f32.mrf.mxu0
  %v1952 = vadd.f32 %v1297, %v1951
  %v1953 = vpop.f32.mrf.mxu0
  %1954 = vmatprep.mubr.f32.mxu0 0.0
  %1955 = vmatmul.mubr.f32.gmra.mxu0 %v1591
  %v1956 = vpop.f32.mrf.mxu0
  %v1957 = vadd.f32 %v1297, %v1956
  %v1958 = vpop.f32.mrf.mxu0
  %1959 = vmatprep.mubr.f32.mxu0 0.0
  %1960 = vmatmul.mubr.f32.gmra.mxu0 %v1594
  %v1961 = vpop.f32.mrf.mxu0
  %v1962 = vadd.f32 %v1297, %v1961
  %v1963 = vpop.f32.mrf.mxu0
  %1964 = vmatprep.mubr.f32.mxu0 0.0
  %1965 = vmatmul.mubr.f32.gmra.mxu0 %v1597
  %v1966 = vpop.f32.mrf.mxu0
  %v1967 = vadd.f32 %v1297, %v1966
  %v1968 = vpop.f32.mrf.mxu0
  %1969 = vmatprep.mubr.f32.mxu0 0.0
  %1970 = vmatmul.mubr.f32.gmra.mxu0 %v1600
  %v1971 = vpop.f32.mrf.mxu0
  %v1972 = vadd.f32 %v1297, %v1971
  %v1973 = vpop.f32.mrf.mxu0
  %1974 = vmatprep.mubr.f32.mxu0 0.0
  %1975 = vmatmul.mubr.f32.gmra.mxu0 %v1603
  %v1976 = vpop.f32.mrf.mxu0
  %v1977 = vadd.f32 %v1297, %v1976
  %v1978 = vpop.f32.mrf.mxu0
  %1979 = vmatprep.mubr.f32.mxu0 0.0
  %1980 = vmatmul.mubr.f32.gmra.mxu0 %v1606
  %v1981 = vpop.f32.mrf.mxu0
  %v1982 = vadd.f32 %v1297, %v1981
  %v1983 = vpop.f32.mrf.mxu0
  %1984 = vmatprep.mubr.f32.mxu0 0.0
  %1985 = vmatmul.mubr.f32.gmra.mxu0 %v1609
  %v1986 = vpop.f32.mrf.mxu0
  %v1987 = vadd.f32 %v1297, %v1986
  %v1988 = vpop.f32.mrf.mxu0
  %1989 = vmatprep.mubr.f32.mxu0 0.0
  %1990 = vmatmul.mubr.f32.gmra.mxu0 %v1612
  %v1991 = vpop.f32.mrf.mxu0
  %v1992 = vadd.f32 %v1297, %v1991
  %v1993 = vpop.f32.mrf.mxu0
  %1994 = vmatprep.mubr.f32.mxu0 0.0
  %1995 = vmatmul.mubr.f32.gmra.mxu0 %v1615
  %v1996 = vpop.f32.mrf.mxu0
  %v1997 = vadd.f32 %v1297, %v1996
  %v1998 = vpop.f32.mrf.mxu0
  %1999 = vmatprep.mubr.f32.mxu0 0.0
  %2000 = vmatmul.mubr.f32.gmra.mxu0 %v1618
  %v2001 = vpop.f32.mrf.mxu0
  %v2002 = vadd.f32 %v1297, %v2001
  %v2003 = vpop.f32.mrf.mxu0
  %2004 = vdwg.mxu0
  %2005 = vst.msk [vmem:[%s7] sm:$0xff] %vm97, %v1687
  %2006 = vst.msk [vmem:[%s7 + $0x8] sm:$0xff] %vm97, %v1692
  %2007 = vst.msk [vmem:[%s7 + $0x10] sm:$0xff] %vm97, %v1697
  %2008 = vst.msk [vmem:[%s7 + $0x18] sm:$0xff] %vm97, %v1702
  %2009 = vst.msk [vmem:[%s7 + $0x20] sm:$0xff] %vm97, %v1707
  %2010 = vst.msk [vmem:[%s7 + $0x28] sm:$0xff] %vm97, %v1712
  %2011 = vst.msk [vmem:[%s7 + $0x30] sm:$0xff] %vm97, %v1717
  %2012 = vst.msk [vmem:[%s7 + $0x38] sm:$0xff] %vm97, %v1722
  %2013 = vst.msk [vmem:[%s7 + $0x40] sm:$0xff] %vm97, %v1727
  %2014 = vst.msk [vmem:[%s7 + $0x48] sm:$0xff] %vm97, %v1732
  %2015 = vst.msk [vmem:[%s7 + $0x50] sm:$0xff] %vm97, %v1737
  %2016 = vst.msk [vmem:[%s7 + $0x58] sm:$0xff] %vm97, %v1742
  %2017 = vst.msk [vmem:[%s7 + $0x60] sm:$0xff] %vm97, %v1747
  %2018 = vst.msk [vmem:[%s7 + $0x68] sm:$0xff] %vm97, %v1752
  %2019 = vst.msk [vmem:[%s7 + $0x70] sm:$0xff] %vm97, %v1757
  %2020 = vst.msk [vmem:[%s7 + $0x78] sm:$0xff] %vm97, %v1762
  %2021 = vst.msk [vmem:[%s7 + $0x80] sm:$0xff] %vm97, %v1767
  %2022 = vst.msk [vmem:[%s7 + $0x88] sm:$0xff] %vm97, %v1772
  %2023 = vst.msk [vmem:[%s7 + $0x90] sm:$0xff] %vm97, %v1777
  %2024 = vst.msk [vmem:[%s7 + $0x98] sm:$0xff] %vm97, %v1782
  %2025 = vst.msk [vmem:[%s7 + $0xa0] sm:$0xff] %vm97, %v1787
  %2026 = vst.msk [vmem:[%s7 + $0xa8] sm:$0xff] %vm97, %v1792
  %2027 = vst.msk [vmem:[%s7 + $0xb0] sm:$0xff] %vm97, %v1797
  %2028 = vst.msk [vmem:[%s7 + $0xb8] sm:$0xff] %vm97, %v1802
  %2029 = vst.msk [vmem:[%s7 + $0xc0] sm:$0xff] %vm97, %v1807
  %2030 = vst.msk [vmem:[%s7 + $0xc8] sm:$0xff] %vm97, %v1812
  %2031 = vst.msk [vmem:[%s7 + $0xd0] sm:$0xff] %vm97, %v1817
  %2032 = vst.msk [vmem:[%s7 + $0xd8] sm:$0xff] %vm97, %v1822
  %2033 = vst.msk [vmem:[%s7 + $0xe0] sm:$0xff] %vm97, %v1827
  %2034 = vst.msk [vmem:[%s7 + $0xe8] sm:$0xff] %vm97, %v1832
  %2035 = vst.msk [vmem:[%s7 + $0xf0] sm:$0xff] %vm97, %v1837
  %2036 = vst.msk [vmem:[%s7 + $0xf8] sm:$0xff] %vm97, %v1842
  %2037 = vst.msk [vmem:[%s7 + $0x100] sm:$0xff] %vm97, %v1847
  %2038 = vst.msk [vmem:[%s7 + $0x108] sm:$0xff] %vm97, %v1852
  %2039 = vst.msk [vmem:[%s7 + $0x110] sm:$0xff] %vm97, %v1857
  %2040 = vst.msk [vmem:[%s7 + $0x118] sm:$0xff] %vm97, %v1862
  %2041 = vst.msk [vmem:[%s7 + $0x120] sm:$0xff] %vm97, %v1867
  %2042 = vst.msk [vmem:[%s7 + $0x128] sm:$0xff] %vm97, %v1872
  %2043 = vst.msk [vmem:[%s7 + $0x130] sm:$0xff] %vm97, %v1877
  %2044 = vst.msk [vmem:[%s7 + $0x138] sm:$0xff] %vm97, %v1882
  %2045 = vst.msk [vmem:[%s7 + $0x140] sm:$0xff] %vm97, %v1887
  %2046 = vst.msk [vmem:[%s7 + $0x148] sm:$0xff] %vm97, %v1892
  %2047 = vst.msk [vmem:[%s7 + $0x150] sm:$0xff] %vm97, %v1897
  %2048 = vst.msk [vmem:[%s7 + $0x158] sm:$0xff] %vm97, %v1902
  %2049 = vst.msk [vmem:[%s7 + $0x160] sm:$0xff] %vm97, %v1907
  %2050 = vst.msk [vmem:[%s7 + $0x168] sm:$0xff] %vm97, %v1912
  %2051 = vst.msk [vmem:[%s7 + $0x170] sm:$0xff] %vm97, %v1917
  %2052 = vst.msk [vmem:[%s7 + $0x178] sm:$0xff] %vm97, %v1922
  %2053 = vst.msk [vmem:[%s7 + $0x180] sm:$0xff] %vm97, %v1927
  %2054 = vst.msk [vmem:[%s7 + $0x188] sm:$0xff] %vm97, %v1932
  %2055 = vst.msk [vmem:[%s7 + $0x190] sm:$0xff] %vm97, %v1937
  %2056 = vst.msk [vmem:[%s7 + $0x198] sm:$0xff] %vm97, %v1942
  %2057 = vst.msk [vmem:[%s7 + $0x1a0] sm:$0xff] %vm97, %v1947
  %2058 = vst.msk [vmem:[%s7 + $0x1a8] sm:$0xff] %vm97, %v1952
  %2059 = vst.msk [vmem:[%s7 + $0x1b0] sm:$0xff] %vm97, %v1957
  %2060 = vst.msk [vmem:[%s7 + $0x1b8] sm:$0xff] %vm97, %v1962
  %2061 = vst.msk [vmem:[%s7 + $0x1c0] sm:$0xff] %vm97, %v1967
  %2062 = vst.msk [vmem:[%s7 + $0x1c8] sm:$0xff] %vm97, %v1972
  %2063 = vst.msk [vmem:[%s7 + $0x1d0] sm:$0xff] %vm97, %v1977
  %2064 = vst.msk [vmem:[%s7 + $0x1d8] sm:$0xff] %vm97, %v1982
  %2065 = vst.msk [vmem:[%s7 + $0x1e0] sm:$0xff] %vm97, %v1987
  %2066 = vst.msk [vmem:[%s7 + $0x1e8] sm:$0xff] %vm97, %v1992
  %2067 = vst.msk [vmem:[%s7 + $0x1f0] sm:$0xff] %vm97, %v1997
  %2068 = vst.msk [vmem:[%s7 + $0x1f8] sm:$0xff] %vm97, %v2002
  // Predicated region
  $region30: #{tpu_custom_call.1} parent=0 // pred_check
    _
  $region31: #{tpu_custom_call.1} parent=0 // pred_check_branch
    %2070 = sbr.rel (0) target = $region33
  $region32: #{tpu_custom_call.1} parent=0 // pred_region
    _
  $region33: #{tpu_custom_call.1} parent=0 // pred_fallthru
    _
  // Predicated region
  $region34: #{tpu_custom_call.1} parent=0 // pred_check
    _
  $region35: #{tpu_custom_call.1} parent=0 // pred_check_branch
    %2072 = sbr.rel (0) target = $region37
  $region36: #{tpu_custom_call.1} parent=0 // pred_region
    _
  $region37: #{tpu_custom_call.1} parent=0 // pred_fallthru
    _

</llo_original>
